<compile_context>
chip_gen: v5e
topology: v5e:2x2
jax: 0.10.0
libtpu: 0.0.40
codegen_flags: <defaults>
</compile_context>

<pallas_src>
import functools

import jax
import jax.numpy as jnp
from jax import lax
from jax.experimental import pallas as pl
from jax.experimental.pallas import tpu as pltpu

SEQ_LEN = 250      # duration_type='normal'
IN_CHANNELS = 63   # hard-coded by EEGTCNModelSub (i == 0 branch)


def _round_up(n, m):
    return (n + m - 1) // m * m


# ----------------------------------------------------------------------------
# Fused kernel: every PlainTemporalBlock + Linear head + sigmoid.
# One grid step processes Bt samples stacked along the lane/time axis.
# ----------------------------------------------------------------------------
def _fused_tcn_kernel(x_ref, w_ref, b_ref, o_ref, buf_a, buf_b, *,
                      block_meta, K, L, Lp, Bt, seg, pad_off,
                      use_residual, lw_col, lb_col, c_last_p, act_dtype):
    W = Bt * seg
    Wo = W - pad_off

    # Zero each sample's causal left-pad window once per grid step.  Conv
    # outputs are written per-sample into activation columns only, so these
    # windows stay zero for the whole step.
    zero = jnp.zeros((buf_a.shape[0], pad_off), act_dtype)
    for s in range(Bt):
        buf_a[:, s * seg:s * seg + pad_off] = zero
        buf_b[:, s * seg:s * seg + pad_off] = zero

    def dilated_conv(src, c_in, c_out, dil, w_row, w_step, b_col):
        # K accumulated MXU dots straight off the ref slices (no im2col slab).
        acc = None
        for j in range(K):
            wj = w_ref[w_row + j * w_step:w_row + j * w_step + c_out, 0:c_in]
            off = pad_off - (K - 1 - j) * dil
            aj = src[0:c_in, off:off + Wo]
            d = jnp.dot(wj, aj, preferred_element_type=jnp.float32)
            acc = d if acc is None else acc + d
        return acc + b_ref[0:c_out, b_col:b_col + 1]          # (c_out, Wo) f32

    src = x_ref
    for m in block_meta:
        ci, co, dil = m["c_in_p"], m["c_out_p"], m["dil"]

        # conv1 -> chomp -> ReLU   (dropout = identity at inference)
        a1 = dilated_conv(src, ci, co, dil, m["w1_row"], m["w_step"], m["b1_col"])
        for s in range(Bt):
            h1 = jnp.maximum(a1[:, s * seg:s * seg + Lp], 0.0)
            buf_b[0:co, s * seg + pad_off:s * seg + pad_off + Lp] = \
                h1.astype(act_dtype)

        # conv2 -> chomp -> ReLU
        a2 = dilated_conv(buf_b, co, co, dil, m["w2_row"], m["w_step"], m["b2_col"])

        res_full = None
        if use_residual and m["has_ds"]:
            res_full = jnp.dot(
                w_ref[m["wd_row"]:m["wd_row"] + co, 0:ci],
                src[0:ci, pad_off:W],
                preferred_element_type=jnp.float32,
            ) + b_ref[0:co, m["bd_col"]:m["bd_col"] + 1]

        # (+ residual) -> last ReLU, written per-sample into buf_a
        for s in range(Bt):
            h2 = jnp.maximum(a2[:, s * seg:s * seg + Lp], 0.0)
            if use_residual:
                if m["has_ds"]:
                    h2 = h2 + res_full[:, s * seg:s * seg + Lp]
                else:
                    h2 = h2 + src[0:ci,
                                  s * seg + pad_off:s * seg + pad_off + Lp
                                  ].astype(jnp.float32)
            out = jnp.maximum(h2, 0.0)
            buf_a[0:co, s * seg + pad_off:s * seg + pad_off + Lp] = \
                out.astype(act_dtype)
        src = buf_a

    # head: Linear(c_last, 1) on the last valid time step, then sigmoid.
    lw = b_ref[0:c_last_p, lw_col:lw_col + 1]
    lb = b_ref[0:1, lb_col:lb_col + 1]
    probs = []
    for s in range(Bt):
        col = s * seg + pad_off + (L - 1)
        last = src[0:c_last_p, col:col + 1].astype(jnp.float32)
        logit = jnp.sum(lw * last, axis=0, keepdims=True) + lb
        probs.append(1.0 / (1.0 + jnp.exp(-logit)))
    o_ref[0:1, 0:Bt] = jnp.concatenate(probs, axis=1)


# ----------------------------------------------------------------------------
# Wrapper: layout plumbing (weight/bias slabs, padded-segment input slab) and
# ONE pallas_call.
# ----------------------------------------------------------------------------
def eeg_tcn_forward(params, x, *, kernel_size, use_residual,
                    batch_tile=2, use_bf16=True):
    """x: (B, 63, L) float32 -> sigmoid probabilities (B, 1)."""
    B, C0, L = x.shape
    K = kernel_size
    cdt = jnp.bfloat16 if use_bf16 else jnp.float32

    blocks = params["blocks"]
    dils = [blk["dilation"] for blk in blocks]
    pad_max = (K - 1) * max(dils)
    pad_off = _round_up(max(pad_max, 1), 128)     # lane-aligned pad window
    Lp = _round_up(L, 128)                        # 250 -> 256
    seg = pad_off + Lp

    Bt = max(1, min(batch_tile, B))
    G = -(-B // Bt)
    W = Bt * seg

    # ---- input slab: (G, c_in_p, W) with per-sample zero left pad ----------
    c_in0_p = _round_up(C0, 8)
    xp = jnp.pad(x, ((0, G * Bt - B), (0, c_in0_p - C0), (0, Lp - L)))
    xp = xp.reshape(G, Bt, c_in0_p, Lp)
    xp = jnp.pad(xp, ((0, 0), (0, 0), (0, 0), (pad_off, 0)))
    x_slab = jnp.transpose(xp, (0, 2, 1, 3)).reshape(G, c_in0_p, W).astype(cdt)

    # ---- pack every weight into one slab, every bias (+ head) into another --
    max_cp = c_in0_p
    for blk in blocks:
        max_cp = max(max_cp, _round_up(blk["w1"].shape[0], 8))
    c_max_p = max_cp
    WCOLS = _round_up(max_cp, 128)

    def _pad2(a, rows, cols):
        r, c = a.shape
        return jnp.pad(a, ((0, rows - r), (0, cols - c)))

    def _bias_col(v, n):
        return jnp.zeros((c_max_p,), jnp.float32).at[:n].set(v.reshape(n))

    wparts, bias_cols, block_meta = [], [], []
    row = col = 0
    c_in, c_in_p = C0, c_in0_p
    for blk in blocks:
        w1, b1, w2, b2, wd, bd = (blk["w1"], blk["b1"], blk["w2"], blk["b2"],
                                  blk["wd"], blk["bd"])
        dil = blk["dilation"]
        c_out = w1.shape[0]
        c_out_p = _round_up(c_out, 8)
        w_step = _round_up(c_out_p, 16)        # bf16 sublane-tile aligned rows

        w1_row = row
        for j in range(K):
            wparts.append(_pad2(w1[:, :, j], w_step, WCOLS)); row += w_step
        w2_row = row
        for j in range(K):
            wparts.append(_pad2(w2[:, :, j], w_step, WCOLS)); row += w_step
        if wd is not None:
            wd_row = row
            wparts.append(_pad2(wd, w_step, WCOLS)); row += w_step
        else:
            wd_row = -1
        b1_col = col; bias_cols.append(_bias_col(b1, c_out)); col += 1
        b2_col = col; bias_cols.append(_bias_col(b2, c_out)); col += 1
        if bd is not None:
            bd_col = col; bias_cols.append(_bias_col(bd, c_out)); col += 1
        else:
            bd_col = -1

        block_meta.append(dict(c_in_p=c_in_p, c_out_p=c_out_p, dil=dil,
                               has_ds=wd is not None, w_step=w_step,
                               w1_row=w1_row, w2_row=w2_row, wd_row=wd_row,
                               b1_col=b1_col, b2_col=b2_col, bd_col=bd_col))
        c_in, c_in_p = c_out, c_out_p

    c_last, c_last_p = c_in, c_in_p
    lw_col = col; bias_cols.append(_bias_col(params["lin_w"][0], c_last)); col += 1
    lb_col = col; bias_cols.append(_bias_col(params["lin_b"], 1)); col += 1

    wslab = jnp.concatenate(wparts, axis=0).astype(cdt)
    bslab = jnp.stack(bias_cols, axis=1)
    bslab = jnp.pad(bslab, ((0, 0), (0, _round_up(col, 128) - col)))

    kernel = functools.partial(
        _fused_tcn_kernel,
        block_meta=tuple(block_meta), K=K, L=L, Lp=Lp, Bt=Bt, seg=seg,
        pad_off=pad_off, use_residual=use_residual,
        lw_col=lw_col, lb_col=lb_col, c_last_p=c_last_p, act_dtype=cdt)

    out = pl.pallas_call(
        kernel,
        out_shape=jax.ShapeDtypeStruct((G, 8, 128), jnp.float32),
        grid=(G,),
        in_specs=[
            pl.BlockSpec((None, c_in0_p, W), lambda g: (g, 0, 0)),
            pl.BlockSpec(wslab.shape, lambda g: (0, 0)),
            pl.BlockSpec(bslab.shape, lambda g: (0, 0)),
        ],
        out_specs=pl.BlockSpec((None, 8, 128), lambda g: (g, 0, 0)),
        scratch_shapes=[pltpu.VMEM((c_max_p, W), cdt),
                        pltpu.VMEM((c_max_p, W), cdt)],
        compiler_params=pltpu.CompilerParams(
            dimension_semantics=("parallel",)),
    )(x_slab, wslab, bslab)

    probs = out[:, 0, :Bt].reshape(G * Bt)[:B]
    return probs[:, None]


# ----------------------------------------------------------------------------
# Deterministic parameter construction (weight_norm folded in)
# ----------------------------------------------------------------------------
def _weight_norm_conv(key, c_out, c_in, k):
    kv, kg, kb = jax.random.split(key, 3)
    v = 0.01 * jax.random.normal(kv, (c_out, c_in, k), jnp.float32)
    g = jax.random.uniform(kg, (c_out, 1, 1), jnp.float32, minval=0.5, maxval=1.5)
    w = g * v / (jnp.sqrt(jnp.sum(v * v, axis=(1, 2), keepdims=True)) + 1e-12)
    b = 0.01 * jax.random.normal(kb, (c_out,), jnp.float32)
    return w, b                                   # (c_out, c_in, K), (c_out,)


def build_params(key, num_channels, kernel_size):
    blocks = []
    for i, c_out in enumerate(num_channels):
        c_in = IN_CHANNELS if i == 0 else num_channels[i - 1]
        key, k1, k2, k3 = jax.random.split(key, 4)
        w1, b1 = _weight_norm_conv(k1, c_out, c_in, kernel_size)
        w2, b2 = _weight_norm_conv(k2, c_out, c_out, kernel_size)
        if c_in != c_out:
            kd1, kd2 = jax.random.split(k3)
            wd = 0.01 * jax.random.normal(kd1, (c_out, c_in), jnp.float32)
            bd = 0.01 * jax.random.normal(kd2, (c_out,), jnp.float32)
        else:
            wd, bd = None, None
        blocks.append(dict(dilation=2 ** i, w1=w1, b1=b1, w2=w2, b2=b2,
                           wd=wd, bd=bd))
    c_last = num_channels[-1]
    key, ka, kb2 = jax.random.split(key, 3)
    lin_w = 0.5 * jax.random.normal(ka, (1, c_last), jnp.float32)
    lin_b = 0.1 * jax.random.normal(kb2, (1,), jnp.float32)
    return dict(blocks=blocks, lin_w=lin_w, lin_b=lin_b)


# ----------------------------------------------------------------------------
# Pure-JAX reference (correctness check)
# ----------------------------------------------------------------------------
def _causal_conv_ref(x, w, b, dil):
    K = w.shape[-1]
    pad = (K - 1) * dil
    xp = jnp.pad(x, ((0, 0), (0, 0), (pad, 0)))
    y = lax.conv_general_dilated(xp, w, window_strides=(1,), padding="VALID",
                                 rhs_dilation=(dil,),
                                 dimension_numbers=("NCH", "OIH", "NCH"))
    return y + b[None, :, None]


def forward_ref(params, x, *, kernel_size, use_residual):
    y = x
    for blk in params["blocks"]:
        dil = blk["dilation"]
        h = jax.nn.relu(_causal_conv_ref(y, blk["w1"], blk["b1"], dil))
        h = jax.nn.relu(_causal_conv_ref(h, blk["w2"], blk["b2"], dil))
        if use_residual:
            if blk["wd"] is None:
                res = y
            else:
                res = jnp.einsum("oc,bcl->bol", blk["wd"], y) + \
                      blk["bd"][None, :, None]
            h = h + res
        y = jax.nn.relu(h)
    logit = y[:, :, -1] @ params["lin_w"].T + params["lin_b"][None, :]
    return jax.nn.sigmoid(logit)


# ----------------------------------------------------------------------------
if __name__ == "__main__":
    num_channels = [8, 8]      # small TCN: 2 levels (module default is [63]*7)
    kernel_size = 3
    use_residual = True
    batch = 4

    key = jax.random.PRNGKey(0)
    kx, kp = jax.random.split(key)
    x = jax.random.normal(kx, (batch, IN_CHANNELS, SEQ_LEN), jnp.float32)
    params = build_params(kp, num_channels, kernel_size)

    out = eeg_tcn_forward(params, x, kernel_size=kernel_size,
                          use_residual=use_residual,
                          batch_tile=2, use_bf16=True)
    out = jax.block_until_ready(out)

    ref = forward_ref(params, x, kernel_size=kernel_size,
                      use_residual=use_residual)
    assert out.shape == (batch, 1), out.shape
    # bf16 MXU inputs with f32 accumulation -> slightly loosened tolerance.
    assert jnp.allclose(out, ref, rtol=5e-2, atol=2e-2), (out, ref)

    print("KERNEL_OK")
</pallas_src>

<mosaic_0001>
module attributes {stable_mosaic.version = 11 : i64} {
  func.func @_fused_tcn_kernel(%arg0: i32, %arg1: memref<1x64x768xbf16, #tpu.memory_space<vmem>>, %arg2: memref<208x128xbf16, #tpu.memory_space<vmem>>, %arg3: memref<64x128xf32, #tpu.memory_space<vmem>>, %arg4: memref<1x8x128xf32, #tpu.memory_space<vmem>>, %arg5: memref<64x768xbf16, #tpu.memory_space<vmem>>, %arg6: memref<64x768xbf16, #tpu.memory_space<vmem>>) attributes {dimension_semantics = [#tpu.dimension_semantics<parallel>], iteration_bounds = array<i64: 2>, scalar_prefetch = 0 : i64, scratch_operands = 2 : i64, tpu.core_type = #tpu.core_type<tc>, window_params = [{transform_indices = @transform_0, window_bounds = array<i64: 1, 64, 768>}, {pipeline_mode = #tpu.pipeline_mode<synchronous>, transform_indices = @transform_1, window_bounds = array<i64: 208, 128>}, {pipeline_mode = #tpu.pipeline_mode<synchronous>, transform_indices = @transform_2, window_bounds = array<i64: 64, 128>}, {transform_indices = @transform_3, window_bounds = array<i64: 1, 8, 128>}]} {
    %cst = arith.constant 0.000000e+00 : bf16
    %0 = vector.broadcast %cst : bf16 to vector<64x128xbf16>
    %c0 = arith.constant 0 : index
    %c0_0 = arith.constant 0 : index
    %1 = vector.load %arg5[%c0, %c0_0] : memref<64x768xbf16, #tpu.memory_space<vmem>>, vector<64x128xbf16>
    tpu.vector_store %arg5[%c0, %c0_0], %0 {strides = array<i32>} : memref<64x768xbf16, #tpu.memory_space<vmem>>, vector<64x128xbf16>,
    %c0_1 = arith.constant 0 : index
    %c0_2 = arith.constant 0 : index
    %2 = vector.load %arg6[%c0_1, %c0_2] : memref<64x768xbf16, #tpu.memory_space<vmem>>, vector<64x128xbf16>
    tpu.vector_store %arg6[%c0_1, %c0_2], %0 {strides = array<i32>} : memref<64x768xbf16, #tpu.memory_space<vmem>>, vector<64x128xbf16>,
    %c0_3 = arith.constant 0 : index
    %c384 = arith.constant 384 : index
    %3 = vector.load %arg5[%c0_3, %c384] : memref<64x768xbf16, #tpu.memory_space<vmem>>, vector<64x128xbf16>
    tpu.vector_store %arg5[%c0_3, %c384], %0 {strides = array<i32>} : memref<64x768xbf16, #tpu.memory_space<vmem>>, vector<64x128xbf16>,
    %c0_4 = arith.constant 0 : index
    %c384_5 = arith.constant 384 : index
    %4 = vector.load %arg6[%c0_4, %c384_5] : memref<64x768xbf16, #tpu.memory_space<vmem>>, vector<64x128xbf16>
    tpu.vector_store %arg6[%c0_4, %c384_5], %0 {strides = array<i32>} : memref<64x768xbf16, #tpu.memory_space<vmem>>, vector<64x128xbf16>,
    %c0_6 = arith.constant 0 : index
    %c0_7 = arith.constant 0 : index
    %5 = vector.load %arg2[%c0_6, %c0_7] : memref<208x128xbf16, #tpu.memory_space<vmem>>, vector<8x64xbf16>
    %c0_8 = arith.constant 0 : index
    %c0_9 = arith.constant 0 : index
    %c126 = arith.constant 126 : index
    %6 = vector.load %arg1[%c0_8, %c0_9, %c126] : memref<1x64x768xbf16, #tpu.memory_space<vmem>>, vector<1x64x640xbf16>
    %7 = vector.shape_cast %6 : vector<1x64x640xbf16> to vector<64x640xbf16>
    %cst_10 = arith.constant dense<0.000000e+00> : vector<8x640xf32>
    %8 = tpu.matmul %5, %7, %cst_10 {dimension_numbers = #tpu.dot_dimension_numbers<[1], [0], [0], [1], [0, 0, 1, 1], [], []>} : vector<8x64xbf16>, vector<64x640xbf16>, vector<8x640xf32> -> vector<8x640xf32>
    %c16 = arith.constant 16 : index
    %c0_11 = arith.constant 0 : index
    %9 = vector.load %arg2[%c16, %c0_11] : memref<208x128xbf16, #tpu.memory_space<vmem>>, vector<8x64xbf16>
    %c0_12 = arith.constant 0 : index
    %c0_13 = arith.constant 0 : index
    %c127 = arith.constant 127 : index
    %10 = vector.load %arg1[%c0_12, %c0_13, %c127] : memref<1x64x768xbf16, #tpu.memory_space<vmem>>, vector<1x64x640xbf16>
    %11 = vector.shape_cast %10 : vector<1x64x640xbf16> to vector<64x640xbf16>
    %cst_14 = arith.constant dense<0.000000e+00> : vector<8x640xf32>
    %12 = tpu.matmul %9, %11, %cst_14 {dimension_numbers = #tpu.dot_dimension_numbers<[1], [0], [0], [1], [0, 0, 1, 1], [], []>} : vector<8x64xbf16>, vector<64x640xbf16>, vector<8x640xf32> -> vector<8x640xf32>
    %13 = arith.addf %8, %12 : vector<8x640xf32>
    %c32 = arith.constant 32 : index
    %c0_15 = arith.constant 0 : index
    %14 = vector.load %arg2[%c32, %c0_15] : memref<208x128xbf16, #tpu.memory_space<vmem>>, vector<8x64xbf16>
    %c0_16 = arith.constant 0 : index
    %c0_17 = arith.constant 0 : index
    %c128 = arith.constant 128 : index
    %15 = vector.load %arg1[%c0_16, %c0_17, %c128] : memref<1x64x768xbf16, #tpu.memory_space<vmem>>, vector<1x64x640xbf16>
    %16 = vector.shape_cast %15 : vector<1x64x640xbf16> to vector<64x640xbf16>
    %cst_18 = arith.constant dense<0.000000e+00> : vector<8x640xf32>
    %17 = tpu.matmul %14, %16, %cst_18 {dimension_numbers = #tpu.dot_dimension_numbers<[1], [0], [0], [1], [0, 0, 1, 1], [], []>} : vector<8x64xbf16>, vector<64x640xbf16>, vector<8x640xf32> -> vector<8x640xf32>
    %18 = arith.addf %13, %17 : vector<8x640xf32>
    %c0_19 = arith.constant 0 : index
    %c0_20 = arith.constant 0 : index
    %19 = vector.load %arg3[%c0_19, %c0_20] : memref<64x128xf32, #tpu.memory_space<vmem>>, vector<8x1xf32>
    %20 = vector.broadcast %19 : vector<8x1xf32> to vector<8x640xf32>
    %21 = arith.addf %18, %20 : vector<8x640xf32>
    %22 = vector.extract_strided_slice %21 {offsets = [0, 0], sizes = [8, 256], strides = [1, 1]} : vector<8x640xf32> to vector<8x256xf32>
    %cst_21 = arith.constant 0.000000e+00 : f32
    %23 = vector.broadcast %cst_21 : f32 to vector<8x256xf32>
    %24 = arith.maximumf %22, %23 : vector<8x256xf32>
    %25 = arith.truncf %24 : vector<8x256xf32> to vector<8x256xbf16>
    %c0_22 = arith.constant 0 : index
    %c128_23 = arith.constant 128 : index
    %26 = vector.load %arg6[%c0_22, %c128_23] : memref<64x768xbf16, #tpu.memory_space<vmem>>, vector<8x256xbf16>
    tpu.vector_store %arg6[%c0_22, %c128_23], %25 {strides = array<i32>} : memref<64x768xbf16, #tpu.memory_space<vmem>>, vector<8x256xbf16>,
    %27 = vector.extract_strided_slice %21 {offsets = [0, 384], sizes = [8, 256], strides = [1, 1]} : vector<8x640xf32> to vector<8x256xf32>
    %cst_24 = arith.constant 0.000000e+00 : f32
    %28 = vector.broadcast %cst_24 : f32 to vector<8x256xf32>
    %29 = arith.maximumf %27, %28 : vector<8x256xf32>
    %30 = arith.truncf %29 : vector<8x256xf32> to vector<8x256xbf16>
    %c0_25 = arith.constant 0 : index
    %c512 = arith.constant 512 : index
    %31 = vector.load %arg6[%c0_25, %c512] : memref<64x768xbf16, #tpu.memory_space<vmem>>, vector<8x256xbf16>
    tpu.vector_store %arg6[%c0_25, %c512], %30 {strides = array<i32>} : memref<64x768xbf16, #tpu.memory_space<vmem>>, vector<8x256xbf16>,
    %c48 = arith.constant 48 : index
    %c0_26 = arith.constant 0 : index
    %32 = vector.load %arg2[%c48, %c0_26] : memref<208x128xbf16, #tpu.memory_space<vmem>>, vector<8x8xbf16>
    %c0_27 = arith.constant 0 : index
    %c126_28 = arith.constant 126 : index
    %33 = vector.load %arg6[%c0_27, %c126_28] : memref<64x768xbf16, #tpu.memory_space<vmem>>, vector<8x640xbf16>
    %cst_29 = arith.constant dense<0.000000e+00> : vector<8x640xf32>
    %34 = tpu.matmul %32, %33, %cst_29 {dimension_numbers = #tpu.dot_dimension_numbers<[1], [0], [0], [1], [0, 0, 1, 1], [], []>} : vector<8x8xbf16>, vector<8x640xbf16>, vector<8x640xf32> -> vector<8x640xf32>
    %c64 = arith.constant 64 : index
    %c0_30 = arith.constant 0 : index
    %35 = vector.load %arg2[%c64, %c0_30] : memref<208x128xbf16, #tpu.memory_space<vmem>>, vector<8x8xbf16>
    %c0_31 = arith.constant 0 : index
    %c127_32 = arith.constant 127 : index
    %36 = vector.load %arg6[%c0_31, %c127_32] : memref<64x768xbf16, #tpu.memory_space<vmem>>, vector<8x640xbf16>
    %cst_33 = arith.constant dense<0.000000e+00> : vector<8x640xf32>
    %37 = tpu.matmul %35, %36, %cst_33 {dimension_numbers = #tpu.dot_dimension_numbers<[1], [0], [0], [1], [0, 0, 1, 1], [], []>} : vector<8x8xbf16>, vector<8x640xbf16>, vector<8x640xf32> -> vector<8x640xf32>
    %38 = arith.addf %34, %37 : vector<8x640xf32>
    %c80 = arith.constant 80 : index
    %c0_34 = arith.constant 0 : index
    %39 = vector.load %arg2[%c80, %c0_34] : memref<208x128xbf16, #tpu.memory_space<vmem>>, vector<8x8xbf16>
    %c0_35 = arith.constant 0 : index
    %c128_36 = arith.constant 128 : index
    %40 = vector.load %arg6[%c0_35, %c128_36] : memref<64x768xbf16, #tpu.memory_space<vmem>>, vector<8x640xbf16>
    %cst_37 = arith.constant dense<0.000000e+00> : vector<8x640xf32>
    %41 = tpu.matmul %39, %40, %cst_37 {dimension_numbers = #tpu.dot_dimension_numbers<[1], [0], [0], [1], [0, 0, 1, 1], [], []>} : vector<8x8xbf16>, vector<8x640xbf16>, vector<8x640xf32> -> vector<8x640xf32>
    %42 = arith.addf %38, %41 : vector<8x640xf32>
    %c0_38 = arith.constant 0 : index
    %c1 = arith.constant 1 : index
    %43 = vector.load %arg3[%c0_38, %c1] : memref<64x128xf32, #tpu.memory_space<vmem>>, vector<8x1xf32>
    %44 = vector.broadcast %43 : vector<8x1xf32> to vector<8x640xf32>
    %45 = arith.addf %42, %44 : vector<8x640xf32>
    %c96 = arith.constant 96 : index
    %c0_39 = arith.constant 0 : index
    %46 = vector.load %arg2[%c96, %c0_39] : memref<208x128xbf16, #tpu.memory_space<vmem>>, vector<8x64xbf16>
    %c0_40 = arith.constant 0 : index
    %c0_41 = arith.constant 0 : index
    %c128_42 = arith.constant 128 : index
    %47 = vector.load %arg1[%c0_40, %c0_41, %c128_42] : memref<1x64x768xbf16, #tpu.memory_space<vmem>>, vector<1x64x640xbf16>
    %48 = vector.shape_cast %47 : vector<1x64x640xbf16> to vector<64x640xbf16>
    %cst_43 = arith.constant dense<0.000000e+00> : vector<8x640xf32>
    %49 = tpu.matmul %46, %48, %cst_43 {dimension_numbers = #tpu.dot_dimension_numbers<[1], [0], [0], [1], [0, 0, 1, 1], [], []>} : vector<8x64xbf16>, vector<64x640xbf16>, vector<8x640xf32> -> vector<8x640xf32>
    %c0_44 = arith.constant 0 : index
    %c2 = arith.constant 2 : index
    %50 = vector.load %arg3[%c0_44, %c2] : memref<64x128xf32, #tpu.memory_space<vmem>>, vector<8x1xf32>
    %51 = vector.broadcast %50 : vector<8x1xf32> to vector<8x640xf32>
    %52 = arith.addf %49, %51 : vector<8x640xf32>
    %53 = vector.extract_strided_slice %45 {offsets = [0, 0], sizes = [8, 256], strides = [1, 1]} : vector<8x640xf32> to vector<8x256xf32>
    %cst_45 = arith.constant 0.000000e+00 : f32
    %54 = vector.broadcast %cst_45 : f32 to vector<8x256xf32>
    %55 = arith.maximumf %53, %54 : vector<8x256xf32>
    %56 = vector.extract_strided_slice %52 {offsets = [0, 0], sizes = [8, 256], strides = [1, 1]} : vector<8x640xf32> to vector<8x256xf32>
    %57 = arith.addf %55, %56 : vector<8x256xf32>
    %cst_46 = arith.constant 0.000000e+00 : f32
    %58 = vector.broadcast %cst_46 : f32 to vector<8x256xf32>
    %59 = arith.maximumf %57, %58 : vector<8x256xf32>
    %60 = arith.truncf %59 : vector<8x256xf32> to vector<8x256xbf16>
    %c0_47 = arith.constant 0 : index
    %c128_48 = arith.constant 128 : index
    %61 = vector.load %arg5[%c0_47, %c128_48] : memref<64x768xbf16, #tpu.memory_space<vmem>>, vector<8x256xbf16>
    tpu.vector_store %arg5[%c0_47, %c128_48], %60 {strides = array<i32>} : memref<64x768xbf16, #tpu.memory_space<vmem>>, vector<8x256xbf16>,
    %62 = vector.extract_strided_slice %45 {offsets = [0, 384], sizes = [8, 256], strides = [1, 1]} : vector<8x640xf32> to vector<8x256xf32>
    %cst_49 = arith.constant 0.000000e+00 : f32
    %63 = vector.broadcast %cst_49 : f32 to vector<8x256xf32>
    %64 = arith.maximumf %62, %63 : vector<8x256xf32>
    %65 = vector.extract_strided_slice %52 {offsets = [0, 384], sizes = [8, 256], strides = [1, 1]} : vector<8x640xf32> to vector<8x256xf32>
    %66 = arith.addf %64, %65 : vector<8x256xf32>
    %cst_50 = arith.constant 0.000000e+00 : f32
    %67 = vector.broadcast %cst_50 : f32 to vector<8x256xf32>
    %68 = arith.maximumf %66, %67 : vector<8x256xf32>
    %69 = arith.truncf %68 : vector<8x256xf32> to vector<8x256xbf16>
    %c0_51 = arith.constant 0 : index
    %c512_52 = arith.constant 512 : index
    %70 = vector.load %arg5[%c0_51, %c512_52] : memref<64x768xbf16, #tpu.memory_space<vmem>>, vector<8x256xbf16>
    tpu.vector_store %arg5[%c0_51, %c512_52], %69 {strides = array<i32>} : memref<64x768xbf16, #tpu.memory_space<vmem>>, vector<8x256xbf16>,
    %c112 = arith.constant 112 : index
    %c0_53 = arith.constant 0 : index
    %71 = vector.load %arg2[%c112, %c0_53] : memref<208x128xbf16, #tpu.memory_space<vmem>>, vector<8x8xbf16>
    %c0_54 = arith.constant 0 : index
    %c124 = arith.constant 124 : index
    %72 = vector.load %arg5[%c0_54, %c124] : memref<64x768xbf16, #tpu.memory_space<vmem>>, vector<8x640xbf16>
    %cst_55 = arith.constant dense<0.000000e+00> : vector<8x640xf32>
    %73 = tpu.matmul %71, %72, %cst_55 {dimension_numbers = #tpu.dot_dimension_numbers<[1], [0], [0], [1], [0, 0, 1, 1], [], []>} : vector<8x8xbf16>, vector<8x640xbf16>, vector<8x640xf32> -> vector<8x640xf32>
    %c128_56 = arith.constant 128 : index
    %c0_57 = arith.constant 0 : index
    %74 = vector.load %arg2[%c128_56, %c0_57] : memref<208x128xbf16, #tpu.memory_space<vmem>>, vector<8x8xbf16>
    %c0_58 = arith.constant 0 : index
    %c126_59 = arith.constant 126 : index
    %75 = vector.load %arg5[%c0_58, %c126_59] : memref<64x768xbf16, #tpu.memory_space<vmem>>, vector<8x640xbf16>
    %cst_60 = arith.constant dense<0.000000e+00> : vector<8x640xf32>
    %76 = tpu.matmul %74, %75, %cst_60 {dimension_numbers = #tpu.dot_dimension_numbers<[1], [0], [0], [1], [0, 0, 1, 1], [], []>} : vector<8x8xbf16>, vector<8x640xbf16>, vector<8x640xf32> -> vector<8x640xf32>
    %77 = arith.addf %73, %76 : vector<8x640xf32>
    %c144 = arith.constant 144 : index
    %c0_61 = arith.constant 0 : index
    %78 = vector.load %arg2[%c144, %c0_61] : memref<208x128xbf16, #tpu.memory_space<vmem>>, vector<8x8xbf16>
    %c0_62 = arith.constant 0 : index
    %c128_63 = arith.constant 128 : index
    %79 = vector.load %arg5[%c0_62, %c128_63] : memref<64x768xbf16, #tpu.memory_space<vmem>>, vector<8x640xbf16>
    %cst_64 = arith.constant dense<0.000000e+00> : vector<8x640xf32>
    %80 = tpu.matmul %78, %79, %cst_64 {dimension_numbers = #tpu.dot_dimension_numbers<[1], [0], [0], [1], [0, 0, 1, 1], [], []>} : vector<8x8xbf16>, vector<8x640xbf16>, vector<8x640xf32> -> vector<8x640xf32>
    %81 = arith.addf %77, %80 : vector<8x640xf32>
    %c0_65 = arith.constant 0 : index
    %c3 = arith.constant 3 : index
    %82 = vector.load %arg3[%c0_65, %c3] : memref<64x128xf32, #tpu.memory_space<vmem>>, vector<8x1xf32>
    %83 = vector.broadcast %82 : vector<8x1xf32> to vector<8x640xf32>
    %84 = arith.addf %81, %83 : vector<8x640xf32>
    %85 = vector.extract_strided_slice %84 {offsets = [0, 0], sizes = [8, 256], strides = [1, 1]} : vector<8x640xf32> to vector<8x256xf32>
    %cst_66 = arith.constant 0.000000e+00 : f32
    %86 = vector.broadcast %cst_66 : f32 to vector<8x256xf32>
    %87 = arith.maximumf %85, %86 : vector<8x256xf32>
    %88 = arith.truncf %87 : vector<8x256xf32> to vector<8x256xbf16>
    %c0_67 = arith.constant 0 : index
    %c128_68 = arith.constant 128 : index
    %89 = vector.load %arg6[%c0_67, %c128_68] : memref<64x768xbf16, #tpu.memory_space<vmem>>, vector<8x256xbf16>
    tpu.vector_store %arg6[%c0_67, %c128_68], %88 {strides = array<i32>} : memref<64x768xbf16, #tpu.memory_space<vmem>>, vector<8x256xbf16>,
    %90 = vector.extract_strided_slice %84 {offsets = [0, 384], sizes = [8, 256], strides = [1, 1]} : vector<8x640xf32> to vector<8x256xf32>
    %cst_69 = arith.constant 0.000000e+00 : f32
    %91 = vector.broadcast %cst_69 : f32 to vector<8x256xf32>
    %92 = arith.maximumf %90, %91 : vector<8x256xf32>
    %93 = arith.truncf %92 : vector<8x256xf32> to vector<8x256xbf16>
    %c0_70 = arith.constant 0 : index
    %c512_71 = arith.constant 512 : index
    %94 = vector.load %arg6[%c0_70, %c512_71] : memref<64x768xbf16, #tpu.memory_space<vmem>>, vector<8x256xbf16>
    tpu.vector_store %arg6[%c0_70, %c512_71], %93 {strides = array<i32>} : memref<64x768xbf16, #tpu.memory_space<vmem>>, vector<8x256xbf16>,
    %c160 = arith.constant 160 : index
    %c0_72 = arith.constant 0 : index
    %95 = vector.load %arg2[%c160, %c0_72] : memref<208x128xbf16, #tpu.memory_space<vmem>>, vector<8x8xbf16>
    %c0_73 = arith.constant 0 : index
    %c124_74 = arith.constant 124 : index
    %96 = vector.load %arg6[%c0_73, %c124_74] : memref<64x768xbf16, #tpu.memory_space<vmem>>, vector<8x640xbf16>
    %cst_75 = arith.constant dense<0.000000e+00> : vector<8x640xf32>
    %97 = tpu.matmul %95, %96, %cst_75 {dimension_numbers = #tpu.dot_dimension_numbers<[1], [0], [0], [1], [0, 0, 1, 1], [], []>} : vector<8x8xbf16>, vector<8x640xbf16>, vector<8x640xf32> -> vector<8x640xf32>
    %c176 = arith.constant 176 : index
    %c0_76 = arith.constant 0 : index
    %98 = vector.load %arg2[%c176, %c0_76] : memref<208x128xbf16, #tpu.memory_space<vmem>>, vector<8x8xbf16>
    %c0_77 = arith.constant 0 : index
    %c126_78 = arith.constant 126 : index
    %99 = vector.load %arg6[%c0_77, %c126_78] : memref<64x768xbf16, #tpu.memory_space<vmem>>, vector<8x640xbf16>
    %cst_79 = arith.constant dense<0.000000e+00> : vector<8x640xf32>
    %100 = tpu.matmul %98, %99, %cst_79 {dimension_numbers = #tpu.dot_dimension_numbers<[1], [0], [0], [1], [0, 0, 1, 1], [], []>} : vector<8x8xbf16>, vector<8x640xbf16>, vector<8x640xf32> -> vector<8x640xf32>
    %101 = arith.addf %97, %100 : vector<8x640xf32>
    %c192 = arith.constant 192 : index
    %c0_80 = arith.constant 0 : index
    %102 = vector.load %arg2[%c192, %c0_80] : memref<208x128xbf16, #tpu.memory_space<vmem>>, vector<8x8xbf16>
    %c0_81 = arith.constant 0 : index
    %c128_82 = arith.constant 128 : index
    %103 = vector.load %arg6[%c0_81, %c128_82] : memref<64x768xbf16, #tpu.memory_space<vmem>>, vector<8x640xbf16>
    %cst_83 = arith.constant dense<0.000000e+00> : vector<8x640xf32>
    %104 = tpu.matmul %102, %103, %cst_83 {dimension_numbers = #tpu.dot_dimension_numbers<[1], [0], [0], [1], [0, 0, 1, 1], [], []>} : vector<8x8xbf16>, vector<8x640xbf16>, vector<8x640xf32> -> vector<8x640xf32>
    %105 = arith.addf %101, %104 : vector<8x640xf32>
    %c0_84 = arith.constant 0 : index
    %c4 = arith.constant 4 : index
    %106 = vector.load %arg3[%c0_84, %c4] : memref<64x128xf32, #tpu.memory_space<vmem>>, vector<8x1xf32>
    %107 = vector.broadcast %106 : vector<8x1xf32> to vector<8x640xf32>
    %108 = arith.addf %105, %107 : vector<8x640xf32>
    %109 = vector.extract_strided_slice %108 {offsets = [0, 0], sizes = [8, 256], strides = [1, 1]} : vector<8x640xf32> to vector<8x256xf32>
    %cst_85 = arith.constant 0.000000e+00 : f32
    %110 = vector.broadcast %cst_85 : f32 to vector<8x256xf32>
    %111 = arith.maximumf %109, %110 : vector<8x256xf32>
    %c0_86 = arith.constant 0 : index
    %c128_87 = arith.constant 128 : index
    %112 = vector.load %arg5[%c0_86, %c128_87] : memref<64x768xbf16, #tpu.memory_space<vmem>>, vector<8x256xbf16>
    %113 = arith.extf %112 : vector<8x256xbf16> to vector<8x256xf32>
    %114 = arith.addf %111, %113 : vector<8x256xf32>
    %cst_88 = arith.constant 0.000000e+00 : f32
    %115 = vector.broadcast %cst_88 : f32 to vector<8x256xf32>
    %116 = arith.maximumf %114, %115 : vector<8x256xf32>
    %117 = arith.truncf %116 : vector<8x256xf32> to vector<8x256xbf16>
    %c0_89 = arith.constant 0 : index
    %c128_90 = arith.constant 128 : index
    %118 = vector.load %arg5[%c0_89, %c128_90] : memref<64x768xbf16, #tpu.memory_space<vmem>>, vector<8x256xbf16>
    tpu.vector_store %arg5[%c0_89, %c128_90], %117 {strides = array<i32>} : memref<64x768xbf16, #tpu.memory_space<vmem>>, vector<8x256xbf16>,
    %119 = vector.extract_strided_slice %108 {offsets = [0, 384], sizes = [8, 256], strides = [1, 1]} : vector<8x640xf32> to vector<8x256xf32>
    %cst_91 = arith.constant 0.000000e+00 : f32
    %120 = vector.broadcast %cst_91 : f32 to vector<8x256xf32>
    %121 = arith.maximumf %119, %120 : vector<8x256xf32>
    %c0_92 = arith.constant 0 : index
    %c512_93 = arith.constant 512 : index
    %122 = vector.load %arg5[%c0_92, %c512_93] : memref<64x768xbf16, #tpu.memory_space<vmem>>, vector<8x256xbf16>
    %123 = arith.extf %122 : vector<8x256xbf16> to vector<8x256xf32>
    %124 = arith.addf %121, %123 : vector<8x256xf32>
    %cst_94 = arith.constant 0.000000e+00 : f32
    %125 = vector.broadcast %cst_94 : f32 to vector<8x256xf32>
    %126 = arith.maximumf %124, %125 : vector<8x256xf32>
    %127 = arith.truncf %126 : vector<8x256xf32> to vector<8x256xbf16>
    %c0_95 = arith.constant 0 : index
    %c512_96 = arith.constant 512 : index
    %128 = vector.load %arg5[%c0_95, %c512_96] : memref<64x768xbf16, #tpu.memory_space<vmem>>, vector<8x256xbf16>
    tpu.vector_store %arg5[%c0_95, %c512_96], %127 {strides = array<i32>} : memref<64x768xbf16, #tpu.memory_space<vmem>>, vector<8x256xbf16>,
    %c0_97 = arith.constant 0 : index
    %c5 = arith.constant 5 : index
    %129 = vector.load %arg3[%c0_97, %c5] : memref<64x128xf32, #tpu.memory_space<vmem>>, vector<8x1xf32>
    %c0_98 = arith.constant 0 : index
    %c6 = arith.constant 6 : index
    %130 = vector.load %arg3[%c0_98, %c6] : memref<64x128xf32, #tpu.memory_space<vmem>>, vector<1x1xf32>
    %c0_99 = arith.constant 0 : index
    %c377 = arith.constant 377 : index
    %131 = vector.load %arg5[%c0_99, %c377] : memref<64x768xbf16, #tpu.memory_space<vmem>>, vector<8x1xbf16>
    %132 = arith.extf %131 : vector<8x1xbf16> to vector<8x1xf32>
    %133 = arith.mulf %129, %132 : vector<8x1xf32>
    %cst_100 = arith.constant dense<0.000000e+00> : vector<1xf32>
    %134 = vector.multi_reduction <add>, %133, %cst_100 [0] : vector<8x1xf32> to vector<1xf32>
    %135 = vector.shape_cast %134 : vector<1xf32> to vector<1x1xf32>
    %136 = arith.addf %135, %130 : vector<1x1xf32>
    %cst_101 = arith.constant 0.000000e+00 : f32
    %137 = vector.broadcast %cst_101 : f32 to vector<1x1xf32>
    %138 = arith.subf %137, %136 : vector<1x1xf32>
    %139 = math.exp %138 : vector<1x1xf32>
    %cst_102 = arith.constant 1.000000e+00 : f32
    %140 = vector.broadcast %cst_102 : f32 to vector<1x1xf32>
    %141 = arith.addf %140, %139 : vector<1x1xf32>
    %cst_103 = arith.constant 1.000000e+00 : f32
    %142 = vector.broadcast %cst_103 : f32 to vector<1x1xf32>
    %143 = arith.divf %142, %141 : vector<1x1xf32>
    %c0_104 = arith.constant 0 : index
    %c761 = arith.constant 761 : index
    %144 = vector.load %arg5[%c0_104, %c761] : memref<64x768xbf16, #tpu.memory_space<vmem>>, vector<8x1xbf16>
    %145 = arith.extf %144 : vector<8x1xbf16> to vector<8x1xf32>
    %146 = arith.mulf %129, %145 : vector<8x1xf32>
    %cst_105 = arith.constant dense<0.000000e+00> : vector<1xf32>
    %147 = vector.multi_reduction <add>, %146, %cst_105 [0] : vector<8x1xf32> to vector<1xf32>
    %148 = vector.shape_cast %147 : vector<1xf32> to vector<1x1xf32>
    %149 = arith.addf %148, %130 : vector<1x1xf32>
    %cst_106 = arith.constant 0.000000e+00 : f32
    %150 = vector.broadcast %cst_106 : f32 to vector<1x1xf32>
    %151 = arith.subf %150, %149 : vector<1x1xf32>
    %152 = math.exp %151 : vector<1x1xf32>
    %cst_107 = arith.constant 1.000000e+00 : f32
    %153 = vector.broadcast %cst_107 : f32 to vector<1x1xf32>
    %154 = arith.addf %153, %152 : vector<1x1xf32>
    %cst_108 = arith.constant 1.000000e+00 : f32
    %155 = vector.broadcast %cst_108 : f32 to vector<1x1xf32>
    %156 = arith.divf %155, %154 : vector<1x1xf32>
    %157 = tpu.concatenate %143, %156 in 1 : vector<1x1xf32>, vector<1x1xf32> -> vector<1x2xf32>
    %c0_109 = arith.constant 0 : index
    %c0_110 = arith.constant 0 : index
    %c0_111 = arith.constant 0 : index
    %158 = vector.load %arg4[%c0_109, %c0_110, %c0_111] : memref<1x8x128xf32, #tpu.memory_space<vmem>>, vector<1x1x2xf32>
    %159 = vector.shape_cast %158 : vector<1x1x2xf32> to vector<1x2xf32>
    %160 = vector.shape_cast %157 : vector<1x2xf32> to vector<1x1x2xf32>
    tpu.vector_store %arg4[%c0_109, %c0_110, %c0_111], %160 {strides = array<i32>} : memref<1x8x128xf32, #tpu.memory_space<vmem>>, vector<1x1x2xf32>,
    return
  }
  func.func @transform_0(%arg0: i32) -> (i32, i32, i32) {
    %c0_i32 = arith.constant 0 : i32
    %c0_i32_0 = arith.constant 0 : i32
    %c0_i32_1 = arith.constant 0 : i32
    return %arg0, %c0_i32, %c0_i32_0 : i32, i32, i32
  }
  func.func @transform_1(%arg0: i32) -> (i32, i32) {
    %c0_i32 = arith.constant 0 : i32
    %c0_i32_0 = arith.constant 0 : i32
    %c0_i32_1 = arith.constant 0 : i32
    return %c0_i32, %c0_i32_0 : i32, i32
  }
  func.func @transform_2(%arg0: i32) -> (i32, i32) {
    %c0_i32 = arith.constant 0 : i32
    %c0_i32_0 = arith.constant 0 : i32
    %c0_i32_1 = arith.constant 0 : i32
    return %c0_i32, %c0_i32_0 : i32, i32
  }
  func.func @transform_3(%arg0: i32) -> (i32, i32, i32) {
    %c0_i32 = arith.constant 0 : i32
    %c0_i32_0 = arith.constant 0 : i32
    %c0_i32_1 = arith.constant 0 : i32
    return %arg0, %c0_i32, %c0_i32_0 : i32, i32, i32
  }
}

</mosaic_0001>

<llo_original>
// kernel: tpu_custom_call.1
$region0: #{tpu_custom_call.1}
  #allocation0 [shape = 'u32[]', space=smem, size = 0x4, offset = 0x4, fixed_abs, tag = 'smem constant byte address 0x4 - core index']
  #allocation1 [shape = 'u32[72,128]{1,0:T(1,128)}', space=vmem, size = 0x9000, scoped, tag = 'internal scratch']
  #allocation2 [shape = 'bf16[64,768]{1,0:T(8,128)(2,1)}', space=vmem, size = 0x18000, scoped, tag = 'scratch operand']
  #allocation3 [shape = 'bf16[64,768]{1,0:T(8,128)(2,1)}', space=vmem, size = 0x18000, scoped, tag = 'scratch operand']
  %s0 = inlined_call_operand.hbm [shape: bf16[2,64,768], index: 0, kind: input, shape index: {}]
  %s1 = inlined_call_operand.hbm [shape: bf16[208,128], index: 1, kind: input, shape index: {}]
  %s2 = inlined_call_operand.hbm [shape: f32[64,128], index: 2, kind: input, shape index: {}]
  %s3 = inlined_call_operand.hbm [shape: f32[2,8,128], index: 3, kind: output, shape index: {}]
  %s4 = sld [smem:[#allocation0]]
  $region57: #{tpu_custom_call.1} parent=0
    _
  %s6 = ssub.s32 1, %s4
  %s7 = scalar_select 0, %s6, %s4
  $region1: #{tpu_custom_call.1} parent=0
    #allocation4 [shape = 'u8[196608]{0}', space=vmem, size = 0x30000, scoped, tag = 'input window, operand 0']
    #allocation5 [shape = 's32[2]{0}', space=sflag, size = 0x8, scoped, tag = 'scoped memory for tpu_custom_call.1']
    #allocation6 [shape = 's32[2]{0}', space=sflag, size = 0x8, scoped, tag = 'scoped memory for tpu_custom_call.1']
    #allocation7 [shape = 'u8[53248]{0}', space=vmem, size = 0xd000, scoped, tag = 'input window, operand 1, single buffered']
    #allocation8 [shape = 's32[1]{0}', space=sflag, size = 0x4, scoped, tag = 'scoped memory for tpu_custom_call.1']
    #allocation9 [shape = 'u8[32768]{0}', space=vmem, size = 0x8000, scoped, tag = 'input window, operand 2, single buffered']
    #allocation10 [shape = 'u8[8192]{0}', space=vmem, size = 0x2000, scoped, tag = 'output window, operand 0']
    %8 = vsyncpa [#allocation5], 0
    %s9 = scalar_lea.sflag [#allocation5], 1
    %10 = vsyncpa %s9, 0
    %11 = vsyncpa [#allocation8], 0
    %12 = vsyncpa [#allocation6], 0
    %s13 = scalar_lea.sflag [#allocation6], 1
    %14 = vsyncpa %s13, 0
    loop: start=0, step=1, limit=4
    $region2: #{tpu_custom_call.1} parent=1 // loop_pre_header
      _
    $region3: #{tpu_custom_call.1} parent=1 // loop_header
      %s16 = sphi 0, %s20
      %p17 = scmp.ge.s32.totalorder %s16, 4
      %s26 = sphi 0, %s28
      %s29 = sphi 0, %s26
      %s30 = sphi 0, %s29
      %s46 = sphi 0, %s30
      %s50 = sphi 0, %s50
      %s52 = sphi 0, %s50
      %s53 = sphi 0, %s52
      %s67 = sphi 0, %s53
      %s71 = sphi 0, %s71
      %s73 = sphi 0, %s71
      %s74 = sphi 0, %s73
      %s88 = sphi 0, %s74
      %s94 = sphi 0, %s96
      %s97 = sphi 0, %s94
      %s98 = sphi 0, %s97
      %s114 = sphi 0, %s98
    $region4: #{tpu_custom_call.1} parent=1 // loop_header_branch
      %19 = sbr.rel (%p17) target = $region8
    $region5: #{tpu_custom_call.1} parent=1 // loop_body
      %s21 = ssub.s32 %s16, 1
      %s22 = ssub.s32 %s16, 2
      %s23 = sadd.s32 %s16, 1
      %s24 = ssub.s32 %s16, %s23
      %p25 = scmp.eq.s32.totalorder %s24, 0
      %s27 = sadd.s32 %s26, 1
      %s28 = scalar_select %p25, %s26, %s27
      %p31 = pneg %p25
      %p32 = scmp.eq.s32.totalorder %s16, 1
      %p33 = por %p31, %p32
      %p34 = scmp.ne.s32.totalorder %s26, %s29
      %p35 = scmp.eq.s32.totalorder %s16, 0
      %p36 = por %p34, %p35
      %p37 = scmp.ne.s32.totalorder %s26, %s29
      %p38 = scmp.eq.s32.totalorder %s21, 1
      %p39 = por %p37, %p38
      %p40 = scmp.ne.s32.totalorder %s29, %s30
      %p41 = scmp.eq.s32.totalorder %s21, 0
      %p42 = por %p40, %p41
      %p43 = scmp.ne.s32.totalorder %s29, %s30
      %p44 = scmp.eq.s32.totalorder %s22, 1
      %p45 = por %p43, %p44
      %p47 = scmp.ne.s32.totalorder %s30, %s46
      %p48 = scmp.eq.s32.totalorder %s22, 0
      %p49 = por %p47, %p48
      %s51 = sadd.s32 %s50, 1
      %p54 = scmp.eq.s32.totalorder %s16, 1
      %p55 = scmp.ne.s32.totalorder %s50, %s52
      %p56 = scmp.eq.s32.totalorder %s16, 0
      %p57 = por %p55, %p56
      %p58 = scmp.ne.s32.totalorder %s50, %s52
      %p59 = scmp.eq.s32.totalorder %s21, 1
      %p60 = por %p58, %p59
      %p61 = scmp.ne.s32.totalorder %s52, %s53
      %p62 = scmp.eq.s32.totalorder %s21, 0
      %p63 = por %p61, %p62
      %p64 = scmp.ne.s32.totalorder %s52, %s53
      %p65 = scmp.eq.s32.totalorder %s22, 1
      %p66 = por %p64, %p65
      %p68 = scmp.ne.s32.totalorder %s53, %s67
      %p69 = scmp.eq.s32.totalorder %s22, 0
      %p70 = por %p68, %p69
      %s72 = sadd.s32 %s71, 1
      %p75 = scmp.eq.s32.totalorder %s16, 1
      %p76 = scmp.ne.s32.totalorder %s71, %s73
      %p77 = scmp.eq.s32.totalorder %s16, 0
      %p78 = por %p76, %p77
      %p79 = scmp.ne.s32.totalorder %s71, %s73
      %p80 = scmp.eq.s32.totalorder %s21, 1
      %p81 = por %p79, %p80
      %p82 = scmp.ne.s32.totalorder %s73, %s74
      %p83 = scmp.eq.s32.totalorder %s21, 0
      %p84 = por %p82, %p83
      %p85 = scmp.ne.s32.totalorder %s73, %s74
      %p86 = scmp.eq.s32.totalorder %s22, 1
      %p87 = por %p85, %p86
      %p89 = scmp.ne.s32.totalorder %s74, %s88
      %p90 = scmp.eq.s32.totalorder %s22, 0
      %p91 = por %p89, %p90
      %s92 = ssub.s32 %s16, %s23
      %p93 = scmp.eq.s32.totalorder %s92, 0
      %s95 = sadd.s32 %s94, 1
      %s96 = scalar_select %p93, %s94, %s95
      %p99 = pneg %p93
      %p100 = scmp.eq.s32.totalorder %s16, 1
      %p101 = por %p99, %p100
      %p102 = scmp.ne.s32.totalorder %s94, %s97
      %p103 = scmp.eq.s32.totalorder %s16, 0
      %p104 = por %p102, %p103
      %p105 = scmp.ne.s32.totalorder %s94, %s97
      %p106 = scmp.eq.s32.totalorder %s21, 1
      %p107 = por %p105, %p106
      %p108 = scmp.ne.s32.totalorder %s97, %s98
      %p109 = scmp.eq.s32.totalorder %s21, 0
      %p110 = por %p108, %p109
      %p111 = scmp.ne.s32.totalorder %s97, %s98
      %p112 = scmp.eq.s32.totalorder %s22, 1
      %p113 = por %p111, %p112
      %p115 = scmp.ne.s32.totalorder %s98, %s114
      %p116 = scmp.eq.s32.totalorder %s22, 0
      %p117 = por %p115, %p116
      %p118 = scmp.le.s32.totalorder 1, %s16
      %p119 = scmp.lt.s32.totalorder %s16, 3
      %p120 = pnand %p118, %p119
      %p121 = pneg %p120
      // Predicated region
      $region9: #{tpu_custom_call.1} parent=5 // pred_check
        _
      $region10: #{tpu_custom_call.1} parent=5 // pred_check_branch
        %123 = sbr.rel (%p120) target = $region12
      $region11: #{tpu_custom_call.1} parent=5 // pred_region
        %s124 = ssub.s32 %s16, 1
        // Predicated region
        $region13: #{tpu_custom_call.1} parent=11 // pred_check
          %p125 = pneg %p63
        $region14: #{tpu_custom_call.1} parent=11 // pred_check_branch
          %127 = sbr.rel (%p125) target = $region16
        $region15: #{tpu_custom_call.1} parent=11 // pred_region
          %129 = vsyncadd [#allocation8], 0
          %s130 = sshll.u32 %s1, 4
          %s131 = int_to_ptr.hbm [resolvable:$true] %s130
          %s132 = sshll.u32 [#allocation7], 4
          %s133 = int_to_ptr.vmem [resolvable:$true] %s132
          %138 = dma.hbm_to_vmem [thread:$0]  %s131, 1664, %s133, [#allocation8], 64, 64, 4
        $region16: #{tpu_custom_call.1} parent=11 // pred_fallthru
          _
        // Predicated region
        $region17: #{tpu_custom_call.1} parent=11 // pred_check
          %p139 = pneg %p84
        $region18: #{tpu_custom_call.1} parent=11 // pred_check_branch
          %141 = sbr.rel (%p139) target = $region20
        $region19: #{tpu_custom_call.1} parent=11 // pred_region
          %143 = vsyncadd [#allocation8], 0
          %s144 = sshll.u32 %s2, 4
          %s145 = int_to_ptr.hbm [resolvable:$true] %s144
          %s146 = sshll.u32 [#allocation9], 4
          %s147 = int_to_ptr.vmem [resolvable:$true] %s146
          %152 = dma.hbm_to_vmem [thread:$0]  %s145, 1024, %s147, [#allocation8], 128, 128, 8
        $region20: #{tpu_custom_call.1} parent=11 // pred_fallthru
          _
      $region12: #{tpu_custom_call.1} parent=5 // pred_fallthru
        _
      %p153 = scmp.lt.s32.totalorder %s16, 2
      // Predicated region
      $region21: #{tpu_custom_call.1} parent=5 // pred_check
        %p154 = pneg %p153
      $region22: #{tpu_custom_call.1} parent=5 // pred_check_branch
        %156 = sbr.rel (%p154) target = $region24
      $region23: #{tpu_custom_call.1} parent=5 // pred_region
        // Predicated region
        $region25: #{tpu_custom_call.1} parent=23 // pred_check
          %p157 = pneg %p36
        $region26: #{tpu_custom_call.1} parent=23 // pred_check_branch
          %159 = sbr.rel (%p157) target = $region28
        $region27: #{tpu_custom_call.1} parent=23 // pred_region
          %s160 = sand.u32 %s26, 1
          %s161 = scalar_lea.sflag [#allocation5], %s160
          %s162 = sand.u32 %s26, 1
          %s163 = smul.addr %s162, 192
          %s164 = scalar_lea.vmem [#allocation4], %s163
          %166 = vsyncadd %s161, 0
          %s167 = smul.addr %s16, 48
          %s168 = smul.addr %s167, 4
          %s169 = scalar_lea.hbm %s0, %s168
          %s170 = sshll.u32 %s169, 4
          %s171 = int_to_ptr.hbm [resolvable:$true] %s170
          %s172 = sshll.u32 %s164, 4
          %s173 = int_to_ptr.vmem [resolvable:$true] %s172
          %178 = dma.hbm_to_vmem [thread:$0]  %s171, 3072, %s173, %s161, 384, 384, 24
        $region28: #{tpu_custom_call.1} parent=23 // pred_fallthru
          _
      $region24: #{tpu_custom_call.1} parent=5 // pred_fallthru
        _
      %p179 = scmp.le.s32.totalorder 1, %s16
      %p180 = scmp.lt.s32.totalorder %s16, 3
      %p181 = pnand %p179, %p180
      %p182 = pneg %p181
      // Predicated region
      $region29: #{tpu_custom_call.1} parent=5 // pred_check
        _
      $region30: #{tpu_custom_call.1} parent=5 // pred_check_branch
        %184 = sbr.rel (%p181) target = $region32
      $region31: #{tpu_custom_call.1} parent=5 // pred_region
        %s185 = ssub.s32 %s16, 1
        %s186 = sand.u32 %s29, 1
        %s187 = scalar_lea.sflag [#allocation5], %s186
        %s188 = sand.u32 %s29, 1
        %s189 = smul.addr %s188, 192
        %s190 = scalar_lea.vmem [#allocation4], %s189
        // Predicated region
        $region33: #{tpu_custom_call.1} parent=31 // pred_check
          %p191 = pneg %p42
        $region34: #{tpu_custom_call.1} parent=31 // pred_check_branch
          %193 = sbr.rel (%p191) target = $region36
        $region35: #{tpu_custom_call.1} parent=31 // pred_region
          %195 = dma.done %s187, 3072
        $region36: #{tpu_custom_call.1} parent=31 // pred_fallthru
          _
        // Predicated region
        $region37: #{tpu_custom_call.1} parent=31 // pred_check
          %p196 = pneg %p63
        $region38: #{tpu_custom_call.1} parent=31 // pred_check_branch
          %198 = sbr.rel (%p196) target = $region40
        $region39: #{tpu_custom_call.1} parent=31 // pred_region
          %200 = dma.done [#allocation8], 1664
        $region40: #{tpu_custom_call.1} parent=31 // pred_fallthru
          _
        // Predicated region
        $region41: #{tpu_custom_call.1} parent=31 // pred_check
          %p201 = pneg %p84
        $region42: #{tpu_custom_call.1} parent=31 // pred_check_branch
          %203 = sbr.rel (%p201) target = $region44
        $region43: #{tpu_custom_call.1} parent=31 // pred_region
          %205 = dma.done [#allocation8], 1024
        $region44: #{tpu_custom_call.1} parent=31 // pred_fallthru
          _
        %s206 = sand.u32 %s29, 1
        %s207 = scalar_lea.sflag [#allocation5], %s206
        %s208 = sand.u32 %s29, 1
        %s209 = smul.addr %s208, 192
        %s210 = scalar_lea.vmem [#allocation4], %s209
        %p211 = pneg %p42
        %p212 = pneg %p39
        %p213 = pneg %p63
        %p214 = pneg %p60
        %p215 = pneg %p84
        %p216 = pneg %p81
        %p217 = pneg %p110
        %p218 = pneg %p107
        %s219 = sand.u32 %s97, 1
        %s220 = scalar_lea.sflag [#allocation6], %s219
        %s221 = sand.u32 %s97, 1
        %s222 = smul.addr %s221, 8
        %s223 = scalar_lea.vmem [#allocation10], %s222
        %225 = vst [vmem:[#allocation2] sm:$0xf] 0
        %226 = vst [vmem:[#allocation2 + $0x18] sm:$0xf] 0
        %227 = vst [vmem:[#allocation2 + $0x30] sm:$0xf] 0
        %228 = vst [vmem:[#allocation2 + $0x48] sm:$0xf] 0
        %229 = vst [vmem:[#allocation2 + $0x60] sm:$0xf] 0
        %230 = vst [vmem:[#allocation2 + $0x78] sm:$0xf] 0
        %231 = vst [vmem:[#allocation2 + $0x90] sm:$0xf] 0
        %232 = vst [vmem:[#allocation2 + $0xa8] sm:$0xf] 0
        %233 = vst [vmem:[#allocation3] sm:$0xf] 0
        %234 = vst [vmem:[#allocation3 + $0x18] sm:$0xf] 0
        %235 = vst [vmem:[#allocation3 + $0x30] sm:$0xf] 0
        %236 = vst [vmem:[#allocation3 + $0x48] sm:$0xf] 0
        %237 = vst [vmem:[#allocation3 + $0x60] sm:$0xf] 0
        %238 = vst [vmem:[#allocation3 + $0x78] sm:$0xf] 0
        %239 = vst [vmem:[#allocation3 + $0x90] sm:$0xf] 0
        %240 = vst [vmem:[#allocation3 + $0xa8] sm:$0xf] 0
        %241 = vst [vmem:[#allocation2 + $0xc] sm:$0xf] 0
        %242 = vst [vmem:[#allocation2 + $0x24] sm:$0xf] 0
        %243 = vst [vmem:[#allocation2 + $0x3c] sm:$0xf] 0
        %244 = vst [vmem:[#allocation2 + $0x54] sm:$0xf] 0
        %245 = vst [vmem:[#allocation2 + $0x6c] sm:$0xf] 0
        %246 = vst [vmem:[#allocation2 + $0x84] sm:$0xf] 0
        %247 = vst [vmem:[#allocation2 + $0x9c] sm:$0xf] 0
        %248 = vst [vmem:[#allocation2 + $0xb4] sm:$0xf] 0
        %249 = vst [vmem:[#allocation3 + $0xc] sm:$0xf] 0
        %250 = vst [vmem:[#allocation3 + $0x24] sm:$0xf] 0
        %251 = vst [vmem:[#allocation3 + $0x3c] sm:$0xf] 0
        %252 = vst [vmem:[#allocation3 + $0x54] sm:$0xf] 0
        %253 = vst [vmem:[#allocation3 + $0x6c] sm:$0xf] 0
        %254 = vst [vmem:[#allocation3 + $0x84] sm:$0xf] 0
        %255 = vst [vmem:[#allocation3 + $0x9c] sm:$0xf] 0
        %256 = vst [vmem:[#allocation3 + $0xb4] sm:$0xf] 0
        %v257 = vld [vmem:[#allocation7] sm:$0xf]
        %v258 = vld [vmem:[%s190] sm:$0xff]
        %v259 = vld [vmem:[%s190 + $0x8] sm:$0xff]
        %v260 = vld [vmem:[%s190 + $0x10] sm:$0xff]
        %v261 = vld [vmem:[%s190 + $0x18] sm:$0xff]
        %v262 = vld [vmem:[%s190 + $0x20] sm:$0xff]
        %v263 = vld [vmem:[%s190 + $0x28] sm:$0xff]
        %v264 = vld [vmem:[%s190 + $0x30] sm:$0xff]
        %v265 = vld [vmem:[%s190 + $0x38] sm:$0xff]
        %v266 = vld [vmem:[%s190 + $0x40] sm:$0xff]
        %v267 = vld [vmem:[%s190 + $0x48] sm:$0xff]
        %v268 = vld [vmem:[%s190 + $0x50] sm:$0xff]
        %v269 = vld [vmem:[%s190 + $0x58] sm:$0xff]
        %v270 = vld [vmem:[%s190 + $0x60] sm:$0xff]
        %v271 = vld [vmem:[%s190 + $0x68] sm:$0xff]
        %v272 = vld [vmem:[%s190 + $0x70] sm:$0xff]
        %v273 = vld [vmem:[%s190 + $0x78] sm:$0xff]
        %v274 = vld [vmem:[%s190 + $0x80] sm:$0xff]
        %v275 = vld [vmem:[%s190 + $0x88] sm:$0xff]
        %v276 = vld [vmem:[%s190 + $0x90] sm:$0xff]
        %v277 = vld [vmem:[%s190 + $0x98] sm:$0xff]
        %v278 = vld [vmem:[%s190 + $0xa0] sm:$0xff]
        %v279 = vld [vmem:[%s190 + $0xa8] sm:$0xff]
        %v280 = vld [vmem:[%s190 + $0xb0] sm:$0xff]
        %v281 = vld [vmem:[%s190 + $0xb8] sm:$0xff]
        %v282 = vld [vmem:[#allocation7 + $0x8] sm:$0xf]
        %v307 = vunpack.c.l.b16 %v258
        %v308 = vunpack.c.h.b16 %v258
        %v309 = vunpack.c.l.b16 %v259
        %v310 = vunpack.c.h.b16 %v259
        %v311 = vunpack.c.l.b16 %v260
        %v312 = vunpack.c.h.b16 %v260
        %v313 = vunpack.c.l.b16 %v261
        %v314 = vunpack.c.h.b16 %v261
        %v315 = vunpack.c.l.b16 %v262
        %v316 = vunpack.c.h.b16 %v262
        %v317 = vunpack.c.l.b16 %v263
        %v318 = vunpack.c.h.b16 %v263
        %v319 = vunpack.c.l.b16 %v264
        %v320 = vunpack.c.h.b16 %v264
        %v321 = vunpack.c.l.b16 %v265
        %v322 = vunpack.c.h.b16 %v265
        %v323 = vunpack.c.l.b16 %v266
        %v324 = vunpack.c.h.b16 %v266
        %v325 = vunpack.c.l.b16 %v267
        %v326 = vunpack.c.h.b16 %v267
        %v327 = vunpack.c.l.b16 %v268
        %v328 = vunpack.c.h.b16 %v268
        %v329 = vunpack.c.l.b16 %v269
        %v330 = vunpack.c.h.b16 %v269
        %v331 = vunpack.c.l.b16 %v270
        %v332 = vunpack.c.h.b16 %v270
        %v333 = vunpack.c.l.b16 %v271
        %v334 = vunpack.c.h.b16 %v271
        %v335 = vunpack.c.l.b16 %v272
        %v336 = vunpack.c.h.b16 %v272
        %v337 = vunpack.c.l.b16 %v273
        %v338 = vunpack.c.h.b16 %v273
        %v339 = vunpack.c.l.b16 %v274
        %v340 = vunpack.c.h.b16 %v274
        %v341 = vunpack.c.l.b16 %v275
        %v342 = vunpack.c.h.b16 %v275
        %v343 = vunpack.c.l.b16 %v276
        %v344 = vunpack.c.h.b16 %v276
        %v345 = vunpack.c.l.b16 %v277
        %v346 = vunpack.c.h.b16 %v277
        %v347 = vunpack.c.l.b16 %v278
        %v348 = vunpack.c.h.b16 %v278
        %v349 = vunpack.c.l.b16 %v279
        %v350 = vunpack.c.h.b16 %v279
        %v351 = vunpack.c.l.b16 %v280
        %v352 = vunpack.c.h.b16 %v280
        %v353 = vunpack.c.l.b16 %v281
        %v354 = vunpack.c.h.b16 %v281
        %v355 = vpack.c.b16 %v313, %v307
        %v356 = vpack.c.b16 %v314, %v308
        %v357 = vpack.c.b16 %v315, %v309
        %v358 = vpack.c.b16 %v316, %v310
        %v359 = vpack.c.b16 %v317, %v311
        %v360 = vpack.c.b16 %v318, %v312
        %v361 = vpack.c.b16 %v325, %v319
        %v362 = vpack.c.b16 %v326, %v320
        %v363 = vpack.c.b16 %v327, %v321
        %v364 = vpack.c.b16 %v328, %v322
        %v365 = vpack.c.b16 %v329, %v323
        %v366 = vpack.c.b16 %v330, %v324
        %v367 = vpack.c.b16 %v337, %v331
        %v368 = vpack.c.b16 %v338, %v332
        %v369 = vpack.c.b16 %v339, %v333
        %v370 = vpack.c.b16 %v340, %v334
        %v371 = vpack.c.b16 %v341, %v335
        %v372 = vpack.c.b16 %v342, %v336
        %v373 = vpack.c.b16 %v349, %v343
        %v374 = vpack.c.b16 %v350, %v344
        %v375 = vpack.c.b16 %v351, %v345
        %v376 = vpack.c.b16 %v352, %v346
        %v377 = vpack.c.b16 %v353, %v347
        %v378 = vpack.c.b16 %v354, %v348
        %379 = vrot.lane.b32.xlu0 %v355, 1
        %v380 = vpop.permute.xlu0 %379
        %381 = vrot.lane.b32.xlu0 %v356, 1
        %v382 = vpop.permute.xlu0 %381
        %383 = vrot.lane.b32.xlu0 %v357, 1
        %v384 = vpop.permute.xlu0 %383
        %385 = vrot.lane.b32.xlu0 %v358, 1
        %v386 = vpop.permute.xlu0 %385
        %387 = vrot.lane.b32.xlu0 %v359, 1
        %v388 = vpop.permute.xlu0 %387
        %389 = vrot.lane.b32.xlu0 %v360, 1
        %v390 = vpop.permute.xlu0 %389
        %391 = vrot.lane.b32.xlu0 %v361, 1
        %v392 = vpop.permute.xlu0 %391
        %393 = vrot.lane.b32.xlu0 %v362, 1
        %v394 = vpop.permute.xlu0 %393
        %395 = vrot.lane.b32.xlu0 %v363, 1
        %v396 = vpop.permute.xlu0 %395
        %397 = vrot.lane.b32.xlu0 %v364, 1
        %v398 = vpop.permute.xlu0 %397
        %399 = vrot.lane.b32.xlu0 %v365, 1
        %v400 = vpop.permute.xlu0 %399
        %401 = vrot.lane.b32.xlu0 %v366, 1
        %v402 = vpop.permute.xlu0 %401
        %403 = vrot.lane.b32.xlu0 %v367, 1
        %v404 = vpop.permute.xlu0 %403
        %405 = vrot.lane.b32.xlu0 %v368, 1
        %v406 = vpop.permute.xlu0 %405
        %407 = vrot.lane.b32.xlu0 %v369, 1
        %v408 = vpop.permute.xlu0 %407
        %409 = vrot.lane.b32.xlu0 %v370, 1
        %v410 = vpop.permute.xlu0 %409
        %411 = vrot.lane.b32.xlu0 %v371, 1
        %v412 = vpop.permute.xlu0 %411
        %413 = vrot.lane.b32.xlu0 %v372, 1
        %v414 = vpop.permute.xlu0 %413
        %415 = vrot.lane.b32.xlu0 %v373, 1
        %v416 = vpop.permute.xlu0 %415
        %417 = vrot.lane.b32.xlu0 %v374, 1
        %v418 = vpop.permute.xlu0 %417
        %419 = vrot.lane.b32.xlu0 %v375, 1
        %v420 = vpop.permute.xlu0 %419
        %421 = vrot.lane.b32.xlu0 %v376, 1
        %v422 = vpop.permute.xlu0 %421
        %423 = vrot.lane.b32.xlu0 %v377, 1
        %v424 = vpop.permute.xlu0 %423
        %425 = vrot.lane.b32.xlu0 %v378, 1
        %v426 = vpop.permute.xlu0 %425
        %vm427 = vcmask 7168
        %v428 = vsel %vm427, %v380, %v382
        %v429 = vsel %vm427, %v382, %v384
        %v430 = vsel %vm427, %v386, %v388
        %v431 = vsel %vm427, %v388, %v390
        %v432 = vsel %vm427, %v392, %v394
        %v433 = vsel %vm427, %v394, %v396
        %v434 = vsel %vm427, %v398, %v400
        %v435 = vsel %vm427, %v400, %v402
        %v436 = vsel %vm427, %v404, %v406
        %v437 = vsel %vm427, %v406, %v408
        %v438 = vsel %vm427, %v410, %v412
        %v439 = vsel %vm427, %v412, %v414
        %v440 = vsel %vm427, %v416, %v418
        %v441 = vsel %vm427, %v418, %v420
        %v442 = vsel %vm427, %v422, %v424
        %v443 = vsel %vm427, %v424, %v426
        %vm460 = vcmask 523264
        %v462 = vsel %vm460, %v282, 0
        %464 = vmatpush.bf16.msra.mxu0 0
        %465 = vmatpush.bf16.msra.mxu0 0
        %466 = vmatpush.bf16.msra.mxu0 0
        %467 = vmatpush.bf16.msra.mxu0 0
        %468 = vmatpush.bf16.msra.mxu0 %v440
        %469 = vmatpush.bf16.msra.mxu0 %v436
        %470 = vmatpush.bf16.msra.mxu0 %v432
        %471 = vmatpush.bf16.msra.mxu0 %v428
        %472 = vmatmul.bf16.gmra.mxu0 %v462
        %v473 = vpop.f32.mrf.mxu0
        %v474 = vadd.f32 0.0, %v473
        %v475 = vpop.f32.mrf.mxu0
        %476 = vdwg.mxu0
        %477 = vmatpush.bf16.msra.mxu0 0
        %478 = vmatpush.bf16.msra.mxu0 0
        %479 = vmatpush.bf16.msra.mxu0 0
        %480 = vmatpush.bf16.msra.mxu0 0
        %481 = vmatpush.bf16.msra.mxu0 %v441
        %482 = vmatpush.bf16.msra.mxu0 %v437
        %483 = vmatpush.bf16.msra.mxu0 %v433
        %484 = vmatpush.bf16.msra.mxu0 %v429
        %485 = vmatmul.bf16.gmra.mxu0 %v462
        %v486 = vpop.f32.mrf.mxu0
        %v487 = vadd.f32 0.0, %v486
        %v488 = vpop.f32.mrf.mxu0
        %489 = vdwg.mxu0
        %490 = vmatpush.bf16.msra.mxu0 0
        %491 = vmatpush.bf16.msra.mxu0 0
        %492 = vmatpush.bf16.msra.mxu0 0
        %493 = vmatpush.bf16.msra.mxu0 0
        %494 = vmatpush.bf16.msra.mxu0 %v442
        %495 = vmatpush.bf16.msra.mxu0 %v438
        %496 = vmatpush.bf16.msra.mxu0 %v434
        %497 = vmatpush.bf16.msra.mxu0 %v430
        %498 = vmatmul.bf16.gmra.mxu0 %v462
        %v499 = vpop.f32.mrf.mxu0
        %v500 = vadd.f32 0.0, %v499
        %v501 = vpop.f32.mrf.mxu0
        %502 = vdwg.mxu0
        %503 = vmatpush.bf16.msra.mxu0 0
        %504 = vmatpush.bf16.msra.mxu0 0
        %505 = vmatpush.bf16.msra.mxu0 0
        %506 = vmatpush.bf16.msra.mxu0 0
        %507 = vmatpush.bf16.msra.mxu0 %v443
        %508 = vmatpush.bf16.msra.mxu0 %v439
        %509 = vmatpush.bf16.msra.mxu0 %v435
        %510 = vmatpush.bf16.msra.mxu0 %v431
        %511 = vmatmul.bf16.gmra.mxu0 %v462
        %v512 = vpop.f32.mrf.mxu0
        %v513 = vadd.f32 0.0, %v512
        %v514 = vpop.f32.mrf.mxu0
        %515 = vdwg.mxu0
        %516 = vrot.lane.b32.xlu0 %v355, 2
        %v517 = vpop.permute.xlu0 %516
        %518 = vrot.lane.b32.xlu0 %v356, 2
        %v519 = vpop.permute.xlu0 %518
        %520 = vrot.lane.b32.xlu0 %v357, 2
        %v521 = vpop.permute.xlu0 %520
        %522 = vrot.lane.b32.xlu0 %v358, 2
        %v523 = vpop.permute.xlu0 %522
        %524 = vrot.lane.b32.xlu0 %v359, 2
        %v525 = vpop.permute.xlu0 %524
        %526 = vrot.lane.b32.xlu0 %v360, 2
        %v527 = vpop.permute.xlu0 %526
        %528 = vrot.lane.b32.xlu0 %v361, 2
        %v529 = vpop.permute.xlu0 %528
        %530 = vrot.lane.b32.xlu0 %v362, 2
        %v531 = vpop.permute.xlu0 %530
        %532 = vrot.lane.b32.xlu0 %v363, 2
        %v533 = vpop.permute.xlu0 %532
        %534 = vrot.lane.b32.xlu0 %v364, 2
        %v535 = vpop.permute.xlu0 %534
        %536 = vrot.lane.b32.xlu0 %v365, 2
        %v537 = vpop.permute.xlu0 %536
        %538 = vrot.lane.b32.xlu0 %v366, 2
        %v539 = vpop.permute.xlu0 %538
        %540 = vrot.lane.b32.xlu0 %v367, 2
        %v541 = vpop.permute.xlu0 %540
        %542 = vrot.lane.b32.xlu0 %v368, 2
        %v543 = vpop.permute.xlu0 %542
        %544 = vrot.lane.b32.xlu0 %v369, 2
        %v545 = vpop.permute.xlu0 %544
        %546 = vrot.lane.b32.xlu0 %v370, 2
        %v547 = vpop.permute.xlu0 %546
        %548 = vrot.lane.b32.xlu0 %v371, 2
        %v549 = vpop.permute.xlu0 %548
        %550 = vrot.lane.b32.xlu0 %v372, 2
        %v551 = vpop.permute.xlu0 %550
        %552 = vrot.lane.b32.xlu0 %v373, 2
        %v553 = vpop.permute.xlu0 %552
        %554 = vrot.lane.b32.xlu0 %v374, 2
        %v555 = vpop.permute.xlu0 %554
        %556 = vrot.lane.b32.xlu0 %v375, 2
        %v557 = vpop.permute.xlu0 %556
        %558 = vrot.lane.b32.xlu0 %v376, 2
        %v559 = vpop.permute.xlu0 %558
        %560 = vrot.lane.b32.xlu0 %v377, 2
        %v561 = vpop.permute.xlu0 %560
        %562 = vrot.lane.b32.xlu0 %v378, 2
        %v563 = vpop.permute.xlu0 %562
        %vm564 = vcmask 15360
        %v565 = vsel %vm564, %v517, %v519
        %v566 = vsel %vm564, %v519, %v521
        %v567 = vsel %vm564, %v523, %v525
        %v568 = vsel %vm564, %v525, %v527
        %v569 = vsel %vm564, %v529, %v531
        %v570 = vsel %vm564, %v531, %v533
        %v571 = vsel %vm564, %v535, %v537
        %v572 = vsel %vm564, %v537, %v539
        %v573 = vsel %vm564, %v541, %v543
        %v574 = vsel %vm564, %v543, %v545
        %v575 = vsel %vm564, %v547, %v549
        %v576 = vsel %vm564, %v549, %v551
        %v577 = vsel %vm564, %v553, %v555
        %v578 = vsel %vm564, %v555, %v557
        %v579 = vsel %vm564, %v559, %v561
        %v580 = vsel %vm564, %v561, %v563
        %v598 = vsel %vm460, %v257, 0
        %600 = vmatpush.bf16.msra.mxu0 0
        %601 = vmatpush.bf16.msra.mxu0 0
        %602 = vmatpush.bf16.msra.mxu0 0
        %603 = vmatpush.bf16.msra.mxu0 0
        %604 = vmatpush.bf16.msra.mxu0 %v577
        %605 = vmatpush.bf16.msra.mxu0 %v573
        %606 = vmatpush.bf16.msra.mxu0 %v569
        %607 = vmatpush.bf16.msra.mxu0 %v565
        %608 = vmatmul.bf16.gmra.mxu0 %v598
        %v609 = vpop.f32.mrf.mxu0
        %v610 = vadd.f32 %v474, %v609
        %v611 = vpop.f32.mrf.mxu0
        %612 = vdwg.mxu0
        %613 = vmatpush.bf16.msra.mxu0 0
        %614 = vmatpush.bf16.msra.mxu0 0
        %615 = vmatpush.bf16.msra.mxu0 0
        %616 = vmatpush.bf16.msra.mxu0 0
        %617 = vmatpush.bf16.msra.mxu0 %v578
        %618 = vmatpush.bf16.msra.mxu0 %v574
        %619 = vmatpush.bf16.msra.mxu0 %v570
        %620 = vmatpush.bf16.msra.mxu0 %v566
        %621 = vmatmul.bf16.gmra.mxu0 %v598
        %v622 = vpop.f32.mrf.mxu0
        %v623 = vadd.f32 %v487, %v622
        %v624 = vpop.f32.mrf.mxu0
        %625 = vdwg.mxu0
        %626 = vmatpush.bf16.msra.mxu0 0
        %627 = vmatpush.bf16.msra.mxu0 0
        %628 = vmatpush.bf16.msra.mxu0 0
        %629 = vmatpush.bf16.msra.mxu0 0
        %630 = vmatpush.bf16.msra.mxu0 %v579
        %631 = vmatpush.bf16.msra.mxu0 %v575
        %632 = vmatpush.bf16.msra.mxu0 %v571
        %633 = vmatpush.bf16.msra.mxu0 %v567
        %634 = vmatmul.bf16.gmra.mxu0 %v598
        %v635 = vpop.f32.mrf.mxu0
        %v636 = vadd.f32 %v500, %v635
        %v637 = vpop.f32.mrf.mxu0
        %638 = vdwg.mxu0
        %639 = vmatpush.bf16.msra.mxu0 0
        %640 = vmatpush.bf16.msra.mxu0 0
        %641 = vmatpush.bf16.msra.mxu0 0
        %642 = vmatpush.bf16.msra.mxu0 0
        %643 = vmatpush.bf16.msra.mxu0 %v580
        %644 = vmatpush.bf16.msra.mxu0 %v576
        %645 = vmatpush.bf16.msra.mxu0 %v572
        %646 = vmatpush.bf16.msra.mxu0 %v568
        %647 = vmatmul.bf16.gmra.mxu0 %v598
        %v648 = vpop.f32.mrf.mxu0
        %v649 = vadd.f32 %v513, %v648
        %v650 = vpop.f32.mrf.mxu0
        %651 = vdwg.mxu0
        %v652 = vld [vmem:[#allocation7 + $0x10] sm:$0xf]
        %v653 = vld [vmem:[%s190 + $0x4] sm:$0xff]
        %v654 = vld [vmem:[%s190 + $0xc] sm:$0xff]
        %v655 = vld [vmem:[%s190 + $0x14] sm:$0xf]
        %v656 = vld [vmem:[%s190 + $0x1c] sm:$0xff]
        %v657 = vld [vmem:[%s190 + $0x24] sm:$0xff]
        %v658 = vld [vmem:[%s190 + $0x2c] sm:$0xf]
        %v659 = vld [vmem:[%s190 + $0x34] sm:$0xff]
        %v660 = vld [vmem:[%s190 + $0x3c] sm:$0xff]
        %v661 = vld [vmem:[%s190 + $0x44] sm:$0xf]
        %v662 = vld [vmem:[%s190 + $0x4c] sm:$0xff]
        %v663 = vld [vmem:[%s190 + $0x54] sm:$0xff]
        %v664 = vld [vmem:[%s190 + $0x5c] sm:$0xf]
        %v665 = vld [vmem:[%s190 + $0x64] sm:$0xff]
        %v666 = vld [vmem:[%s190 + $0x6c] sm:$0xff]
        %v667 = vld [vmem:[%s190 + $0x74] sm:$0xf]
        %v668 = vld [vmem:[%s190 + $0x7c] sm:$0xff]
        %v669 = vld [vmem:[%s190 + $0x84] sm:$0xff]
        %v670 = vld [vmem:[%s190 + $0x8c] sm:$0xf]
        %v671 = vld [vmem:[%s190 + $0x94] sm:$0xff]
        %v672 = vld [vmem:[%s190 + $0x9c] sm:$0xff]
        %v673 = vld [vmem:[%s190 + $0xa4] sm:$0xf]
        %v674 = vld [vmem:[%s190 + $0xac] sm:$0xff]
        %v675 = vld [vmem:[%s190 + $0xb4] sm:$0xff]
        %v676 = vld [vmem:[%s190 + $0xbc] sm:$0xf]
        %v701 = vunpack.c.l.b16 %v653
        %v702 = vunpack.c.h.b16 %v653
        %v703 = vunpack.c.h.b16 %v654
        %v704 = vunpack.c.l.b16 %v655
        %v705 = vunpack.c.l.b16 %v656
        %v706 = vunpack.c.h.b16 %v656
        %v707 = vunpack.c.h.b16 %v657
        %v708 = vunpack.c.l.b16 %v658
        %v709 = vunpack.c.l.b16 %v659
        %v710 = vunpack.c.h.b16 %v659
        %v711 = vunpack.c.h.b16 %v660
        %v712 = vunpack.c.l.b16 %v661
        %v713 = vunpack.c.l.b16 %v662
        %v714 = vunpack.c.h.b16 %v662
        %v715 = vunpack.c.h.b16 %v663
        %v716 = vunpack.c.l.b16 %v664
        %v717 = vunpack.c.l.b16 %v665
        %v718 = vunpack.c.h.b16 %v665
        %v719 = vunpack.c.h.b16 %v666
        %v720 = vunpack.c.l.b16 %v667
        %v721 = vunpack.c.l.b16 %v668
        %v722 = vunpack.c.h.b16 %v668
        %v723 = vunpack.c.h.b16 %v669
        %v724 = vunpack.c.l.b16 %v670
        %v725 = vunpack.c.l.b16 %v671
        %v726 = vunpack.c.h.b16 %v671
        %v727 = vunpack.c.h.b16 %v672
        %v728 = vunpack.c.l.b16 %v673
        %v729 = vunpack.c.l.b16 %v674
        %v730 = vunpack.c.h.b16 %v674
        %v731 = vunpack.c.h.b16 %v675
        %v732 = vunpack.c.l.b16 %v676
        %v733 = vpack.c.b16 %v705, %v701
        %v734 = vpack.c.b16 %v706, %v702
        %v735 = vpack.c.b16 %v707, %v703
        %v736 = vpack.c.b16 %v708, %v704
        %v737 = vpack.c.b16 %v713, %v709
        %v738 = vpack.c.b16 %v714, %v710
        %v739 = vpack.c.b16 %v715, %v711
        %v740 = vpack.c.b16 %v716, %v712
        %v741 = vpack.c.b16 %v721, %v717
        %v742 = vpack.c.b16 %v722, %v718
        %v743 = vpack.c.b16 %v723, %v719
        %v744 = vpack.c.b16 %v724, %v720
        %v745 = vpack.c.b16 %v729, %v725
        %v746 = vpack.c.b16 %v730, %v726
        %v747 = vpack.c.b16 %v731, %v727
        %v748 = vpack.c.b16 %v732, %v728
        %v766 = vsel %vm460, %v652, 0
        %768 = vmatpush.bf16.msra.mxu0 0
        %769 = vmatpush.bf16.msra.mxu0 0
        %770 = vmatpush.bf16.msra.mxu0 0
        %771 = vmatpush.bf16.msra.mxu0 0
        %772 = vmatpush.bf16.msra.mxu0 %v745
        %773 = vmatpush.bf16.msra.mxu0 %v741
        %774 = vmatpush.bf16.msra.mxu0 %v737
        %775 = vmatpush.bf16.msra.mxu0 %v733
        %776 = vmatmul.bf16.gmra.mxu0 %v766
        %v777 = vpop.f32.mrf.mxu0
        %v778 = vadd.f32 0.0, %v777
        %v779 = vpop.f32.mrf.mxu0
        %780 = vdwg.mxu0
        %781 = vmatpush.bf16.msra.mxu0 0
        %782 = vmatpush.bf16.msra.mxu0 0
        %783 = vmatpush.bf16.msra.mxu0 0
        %784 = vmatpush.bf16.msra.mxu0 0
        %785 = vmatpush.bf16.msra.mxu0 %v746
        %786 = vmatpush.bf16.msra.mxu0 %v742
        %787 = vmatpush.bf16.msra.mxu0 %v738
        %788 = vmatpush.bf16.msra.mxu0 %v734
        %789 = vmatmul.bf16.gmra.mxu0 %v766
        %v790 = vpop.f32.mrf.mxu0
        %v791 = vadd.f32 0.0, %v790
        %v792 = vpop.f32.mrf.mxu0
        %793 = vdwg.mxu0
        %794 = vmatpush.bf16.msra.mxu0 0
        %795 = vmatpush.bf16.msra.mxu0 0
        %796 = vmatpush.bf16.msra.mxu0 0
        %797 = vmatpush.bf16.msra.mxu0 0
        %798 = vmatpush.bf16.msra.mxu0 %v747
        %799 = vmatpush.bf16.msra.mxu0 %v743
        %800 = vmatpush.bf16.msra.mxu0 %v739
        %801 = vmatpush.bf16.msra.mxu0 %v735
        %802 = vmatmul.bf16.gmra.mxu0 %v766
        %v803 = vpop.f32.mrf.mxu0
        %v804 = vadd.f32 0.0, %v803
        %v805 = vpop.f32.mrf.mxu0
        %806 = vdwg.mxu0
        %807 = vmatpush.bf16.msra.mxu0 0
        %808 = vmatpush.bf16.msra.mxu0 0
        %809 = vmatpush.bf16.msra.mxu0 0
        %810 = vmatpush.bf16.msra.mxu0 0
        %811 = vmatpush.bf16.msra.mxu0 %v748
        %812 = vmatpush.bf16.msra.mxu0 %v744
        %813 = vmatpush.bf16.msra.mxu0 %v740
        %814 = vmatpush.bf16.msra.mxu0 %v736
        %815 = vmatmul.bf16.gmra.mxu0 %v766
        %v816 = vpop.f32.mrf.mxu0
        %v817 = vadd.f32 0.0, %v816
        %v818 = vpop.f32.mrf.mxu0
        %819 = vdwg.mxu0
        %v820 = vadd.f32 %v610, %v778
        %v821 = vadd.f32 %v623, %v791
        %v822 = vadd.f32 %v636, %v804
        %v823 = vadd.f32 %v649, %v817
        %v824 = vld [vmem:[#allocation9] sm:$0xff]
        %826 = vset.pattern.permute.xlu0 0
        %827 = vperm.xlu0 %826, %v824
        %v828 = vpop.permute.xlu0 %827
        %v830 = vadd.f32 %v820, %v828
        %v831 = vadd.f32 %v821, %v828
        %v832 = vadd.f32 %v822, %v828
        %v833 = vadd.f32 %v823, %v828
        %v834 = vmax.f32 %v830, 0.0
        %v835 = vmax.f32 %v831, 0.0
        %v836 = vpack.c.bf16 %v835, %v834
        %837 = vst [vmem:[#allocation3 + $0x4] sm:$0xff] %v836
        %v838 = vmax.f32 %v832, 0.0
        %v839 = vmax.f32 %v833, 0.0
        %v840 = vpack.c.bf16 %v839, %v838
        %841 = vst [vmem:[#allocation3 + $0x10] sm:$0xff] %v840
        %v842 = vld [vmem:[#allocation7 + $0x18] sm:$0xf]
        %v843 = vld [vmem:[#allocation3] sm:$0xff]
        %v844 = vld [vmem:[#allocation3 + $0x8] sm:$0xff]
        %v845 = vld [vmem:[#allocation3 + $0x10] sm:$0xff]
        %v846 = vld [vmem:[#allocation7 + $0x20] sm:$0xf]
        %v850 = vunpack.c.l.b16 %v843
        %v851 = vunpack.c.h.b16 %v843
        %v852 = vunpack.c.l.b16 %v844
        %v853 = vunpack.c.h.b16 %v844
        %v854 = vunpack.c.l.b16 %v845
        %v855 = vunpack.c.h.b16 %v845
        %v856 = vpack.c.b16 %v850, %v850
        %v857 = vpack.c.b16 %v851, %v851
        %v858 = vpack.c.b16 %v852, %v852
        %v859 = vpack.c.b16 %v853, %v853
        %v860 = vpack.c.b16 %v854, %v854
        %v861 = vpack.c.b16 %v855, %v855
        %862 = vrot.lane.b32.xlu0 %v856, 1
        %v863 = vpop.permute.xlu0 %862
        %864 = vrot.lane.b32.xlu0 %v857, 1
        %v865 = vpop.permute.xlu0 %864
        %866 = vrot.lane.b32.xlu0 %v858, 1
        %v867 = vpop.permute.xlu0 %866
        %868 = vrot.lane.b32.xlu0 %v859, 1
        %v869 = vpop.permute.xlu0 %868
        %870 = vrot.lane.b32.xlu0 %v860, 1
        %v871 = vpop.permute.xlu0 %870
        %872 = vrot.lane.b32.xlu0 %v861, 1
        %v873 = vpop.permute.xlu0 %872
        %v874 = vsel %vm427, %v863, %v865
        %v875 = vsel %vm427, %v865, %v867
        %v876 = vsel %vm427, %v869, %v871
        %v877 = vsel %vm427, %v871, %v873
        %vm878 = vcmask 64512
        %v880 = vsel %vm878, %v846, 0
        %vm882 = vcmask 1043456
        %v884 = vsel %vm882, %v874, 0
        %v887 = vsel %vm882, %v875, 0
        %v890 = vsel %vm882, %v876, 0
        %v893 = vsel %vm882, %v877, 0
        %895 = vmatpush.bf16.msra.mxu0 0
        %896 = vmatpush.bf16.msra.mxu0 0
        %897 = vmatpush.bf16.msra.mxu0 0
        %898 = vmatpush.bf16.msra.mxu0 0
        %899 = vmatpush.bf16.msra.mxu0 0
        %900 = vmatpush.bf16.msra.mxu0 0
        %901 = vmatpush.bf16.msra.mxu0 0
        %902 = vmatpush.bf16.msra.mxu0 %v884
        %903 = vmatmul.bf16.gmra.mxu0 %v880
        %v904 = vpop.f32.mrf.mxu0
        %v905 = vadd.f32 0.0, %v904
        %v906 = vpop.f32.mrf.mxu0
        %907 = vdwg.mxu0
        %908 = vmatpush.bf16.msra.mxu0 0
        %909 = vmatpush.bf16.msra.mxu0 0
        %910 = vmatpush.bf16.msra.mxu0 0
        %911 = vmatpush.bf16.msra.mxu0 0
        %912 = vmatpush.bf16.msra.mxu0 0
        %913 = vmatpush.bf16.msra.mxu0 0
        %914 = vmatpush.bf16.msra.mxu0 0
        %915 = vmatpush.bf16.msra.mxu0 %v887
        %916 = vmatmul.bf16.gmra.mxu0 %v880
        %v917 = vpop.f32.mrf.mxu0
        %v918 = vadd.f32 0.0, %v917
        %v919 = vpop.f32.mrf.mxu0
        %920 = vdwg.mxu0
        %921 = vmatpush.bf16.msra.mxu0 0
        %922 = vmatpush.bf16.msra.mxu0 0
        %923 = vmatpush.bf16.msra.mxu0 0
        %924 = vmatpush.bf16.msra.mxu0 0
        %925 = vmatpush.bf16.msra.mxu0 0
        %926 = vmatpush.bf16.msra.mxu0 0
        %927 = vmatpush.bf16.msra.mxu0 0
        %928 = vmatpush.bf16.msra.mxu0 %v890
        %929 = vmatmul.bf16.gmra.mxu0 %v880
        %v930 = vpop.f32.mrf.mxu0
        %v931 = vadd.f32 0.0, %v930
        %v932 = vpop.f32.mrf.mxu0
        %933 = vdwg.mxu0
        %934 = vmatpush.bf16.msra.mxu0 0
        %935 = vmatpush.bf16.msra.mxu0 0
        %936 = vmatpush.bf16.msra.mxu0 0
        %937 = vmatpush.bf16.msra.mxu0 0
        %938 = vmatpush.bf16.msra.mxu0 0
        %939 = vmatpush.bf16.msra.mxu0 0
        %940 = vmatpush.bf16.msra.mxu0 0
        %941 = vmatpush.bf16.msra.mxu0 %v893
        %942 = vmatmul.bf16.gmra.mxu0 %v880
        %v943 = vpop.f32.mrf.mxu0
        %v944 = vadd.f32 0.0, %v943
        %v945 = vpop.f32.mrf.mxu0
        %946 = vdwg.mxu0
        %947 = vrot.lane.b32.xlu0 %v856, 2
        %v948 = vpop.permute.xlu0 %947
        %949 = vrot.lane.b32.xlu0 %v857, 2
        %v950 = vpop.permute.xlu0 %949
        %951 = vrot.lane.b32.xlu0 %v858, 2
        %v952 = vpop.permute.xlu0 %951
        %953 = vrot.lane.b32.xlu0 %v859, 2
        %v954 = vpop.permute.xlu0 %953
        %955 = vrot.lane.b32.xlu0 %v860, 2
        %v956 = vpop.permute.xlu0 %955
        %957 = vrot.lane.b32.xlu0 %v861, 2
        %v958 = vpop.permute.xlu0 %957
        %v959 = vsel %vm564, %v948, %v950
        %v960 = vsel %vm564, %v950, %v952
        %v961 = vsel %vm564, %v954, %v956
        %v962 = vsel %vm564, %v956, %v958
        %v964 = vsel %vm878, %v842, 0
        %v967 = vsel %vm882, %v959, 0
        %v970 = vsel %vm882, %v960, 0
        %v973 = vsel %vm882, %v961, 0
        %v976 = vsel %vm882, %v962, 0
        %978 = vmatpush.bf16.msra.mxu0 0
        %979 = vmatpush.bf16.msra.mxu0 0
        %980 = vmatpush.bf16.msra.mxu0 0
        %981 = vmatpush.bf16.msra.mxu0 0
        %982 = vmatpush.bf16.msra.mxu0 0
        %983 = vmatpush.bf16.msra.mxu0 0
        %984 = vmatpush.bf16.msra.mxu0 0
        %985 = vmatpush.bf16.msra.mxu0 %v967
        %986 = vmatmul.bf16.gmra.mxu0 %v964
        %v987 = vpop.f32.mrf.mxu0
        %v988 = vadd.f32 %v905, %v987
        %v989 = vpop.f32.mrf.mxu0
        %990 = vdwg.mxu0
        %991 = vmatpush.bf16.msra.mxu0 0
        %992 = vmatpush.bf16.msra.mxu0 0
        %993 = vmatpush.bf16.msra.mxu0 0
        %994 = vmatpush.bf16.msra.mxu0 0
        %995 = vmatpush.bf16.msra.mxu0 0
        %996 = vmatpush.bf16.msra.mxu0 0
        %997 = vmatpush.bf16.msra.mxu0 0
        %998 = vmatpush.bf16.msra.mxu0 %v970
        %999 = vmatmul.bf16.gmra.mxu0 %v964
        %v1000 = vpop.f32.mrf.mxu0
        %v1001 = vadd.f32 %v918, %v1000
        %v1002 = vpop.f32.mrf.mxu0
        %1003 = vdwg.mxu0
        %1004 = vmatpush.bf16.msra.mxu0 0
        %1005 = vmatpush.bf16.msra.mxu0 0
        %1006 = vmatpush.bf16.msra.mxu0 0
        %1007 = vmatpush.bf16.msra.mxu0 0
        %1008 = vmatpush.bf16.msra.mxu0 0
        %1009 = vmatpush.bf16.msra.mxu0 0
        %1010 = vmatpush.bf16.msra.mxu0 0
        %1011 = vmatpush.bf16.msra.mxu0 %v973
        %1012 = vmatmul.bf16.gmra.mxu0 %v964
        %v1013 = vpop.f32.mrf.mxu0
        %v1014 = vadd.f32 %v931, %v1013
        %v1015 = vpop.f32.mrf.mxu0
        %1016 = vdwg.mxu0
        %1017 = vmatpush.bf16.msra.mxu0 0
        %1018 = vmatpush.bf16.msra.mxu0 0
        %1019 = vmatpush.bf16.msra.mxu0 0
        %1020 = vmatpush.bf16.msra.mxu0 0
        %1021 = vmatpush.bf16.msra.mxu0 0
        %1022 = vmatpush.bf16.msra.mxu0 0
        %1023 = vmatpush.bf16.msra.mxu0 0
        %1024 = vmatpush.bf16.msra.mxu0 %v976
        %1025 = vmatmul.bf16.gmra.mxu0 %v964
        %v1026 = vpop.f32.mrf.mxu0
        %v1027 = vadd.f32 %v944, %v1026
        %v1028 = vpop.f32.mrf.mxu0
        %1029 = vdwg.mxu0
        %v1030 = vld [vmem:[#allocation7 + $0x28] sm:$0xf]
        %v1031 = vld [vmem:[#allocation3 + $0x4] sm:$0xff]
        %v1032 = vld [vmem:[#allocation3 + $0xc] sm:$0xff]
        %v1033 = vld [vmem:[#allocation3 + $0x14] sm:$0xf]
        %v1037 = vunpack.c.l.b16 %v1031
        %v1038 = vunpack.c.h.b16 %v1031
        %v1039 = vunpack.c.h.b16 %v1032
        %v1040 = vunpack.c.l.b16 %v1033
        %v1041 = vpack.c.b16 %v1037, %v1037
        %v1042 = vpack.c.b16 %v1038, %v1038
        %v1043 = vpack.c.b16 %v1039, %v1039
        %v1044 = vpack.c.b16 %v1040, %v1040
        %v1046 = vsel %vm878, %v1030, 0
        %v1049 = vsel %vm882, %v1041, 0
        %v1052 = vsel %vm882, %v1042, 0
        %v1055 = vsel %vm882, %v1043, 0
        %v1058 = vsel %vm882, %v1044, 0
        %1060 = vmatpush.bf16.msra.mxu0 0
        %1061 = vmatpush.bf16.msra.mxu0 0
        %1062 = vmatpush.bf16.msra.mxu0 0
        %1063 = vmatpush.bf16.msra.mxu0 0
        %1064 = vmatpush.bf16.msra.mxu0 0
        %1065 = vmatpush.bf16.msra.mxu0 0
        %1066 = vmatpush.bf16.msra.mxu0 0
        %1067 = vmatpush.bf16.msra.mxu0 %v1049
        %1068 = vmatmul.bf16.gmra.mxu0 %v1046
        %v1069 = vpop.f32.mrf.mxu0
        %v1070 = vadd.f32 0.0, %v1069
        %v1071 = vpop.f32.mrf.mxu0
        %1072 = vdwg.mxu0
        %1073 = vmatpush.bf16.msra.mxu0 0
        %1074 = vmatpush.bf16.msra.mxu0 0
        %1075 = vmatpush.bf16.msra.mxu0 0
        %1076 = vmatpush.bf16.msra.mxu0 0
        %1077 = vmatpush.bf16.msra.mxu0 0
        %1078 = vmatpush.bf16.msra.mxu0 0
        %1079 = vmatpush.bf16.msra.mxu0 0
        %1080 = vmatpush.bf16.msra.mxu0 %v1052
        %1081 = vmatmul.bf16.gmra.mxu0 %v1046
        %v1082 = vpop.f32.mrf.mxu0
        %v1083 = vadd.f32 0.0, %v1082
        %v1084 = vpop.f32.mrf.mxu0
        %1085 = vdwg.mxu0
        %1086 = vmatpush.bf16.msra.mxu0 0
        %1087 = vmatpush.bf16.msra.mxu0 0
        %1088 = vmatpush.bf16.msra.mxu0 0
        %1089 = vmatpush.bf16.msra.mxu0 0
        %1090 = vmatpush.bf16.msra.mxu0 0
        %1091 = vmatpush.bf16.msra.mxu0 0
        %1092 = vmatpush.bf16.msra.mxu0 0
        %1093 = vmatpush.bf16.msra.mxu0 %v1055
        %1094 = vmatmul.bf16.gmra.mxu0 %v1046
        %v1095 = vpop.f32.mrf.mxu0
        %v1096 = vadd.f32 0.0, %v1095
        %v1097 = vpop.f32.mrf.mxu0
        %1098 = vdwg.mxu0
        %1099 = vmatpush.bf16.msra.mxu0 0
        %1100 = vmatpush.bf16.msra.mxu0 0
        %1101 = vmatpush.bf16.msra.mxu0 0
        %1102 = vmatpush.bf16.msra.mxu0 0
        %1103 = vmatpush.bf16.msra.mxu0 0
        %1104 = vmatpush.bf16.msra.mxu0 0
        %1105 = vmatpush.bf16.msra.mxu0 0
        %1106 = vmatpush.bf16.msra.mxu0 %v1058
        %1107 = vmatmul.bf16.gmra.mxu0 %v1046
        %v1108 = vpop.f32.mrf.mxu0
        %v1109 = vadd.f32 0.0, %v1108
        %v1110 = vpop.f32.mrf.mxu0
        %1111 = vdwg.mxu0
        %v1112 = vadd.f32 %v988, %v1070
        %v1113 = vadd.f32 %v1001, %v1083
        %v1114 = vadd.f32 %v1014, %v1096
        %v1115 = vadd.f32 %v1027, %v1109
        %v1116 = vld [vmem:[#allocation9] sm:$0xff]
        %1118 = vset.pattern.permute.xlu0 1
        %1119 = vperm.xlu0 %1118, %v1116
        %v1120 = vpop.permute.xlu0 %1119
        %v1122 = vadd.f32 %v1112, %v1120
        %v1123 = vadd.f32 %v1113, %v1120
        %v1124 = vadd.f32 %v1114, %v1120
        %v1125 = vadd.f32 %v1115, %v1120
        %v1126 = vld [vmem:[#allocation7 + $0x30] sm:$0xf]
        %v1127 = vld [vmem:[%s190 + $0x4] sm:$0xff]
        %v1128 = vld [vmem:[%s190 + $0xc] sm:$0xff]
        %v1129 = vld [vmem:[%s190 + $0x14] sm:$0xf]
        %v1130 = vld [vmem:[%s190 + $0x1c] sm:$0xff]
        %v1131 = vld [vmem:[%s190 + $0x24] sm:$0xff]
        %v1132 = vld [vmem:[%s190 + $0x2c] sm:$0xf]
        %v1133 = vld [vmem:[%s190 + $0x34] sm:$0xff]
        %v1134 = vld [vmem:[%s190 + $0x3c] sm:$0xff]
        %v1135 = vld [vmem:[%s190 + $0x44] sm:$0xf]
        %v1136 = vld [vmem:[%s190 + $0x4c] sm:$0xff]
        %v1137 = vld [vmem:[%s190 + $0x54] sm:$0xff]
        %v1138 = vld [vmem:[%s190 + $0x5c] sm:$0xf]
        %v1139 = vld [vmem:[%s190 + $0x64] sm:$0xff]
        %v1140 = vld [vmem:[%s190 + $0x6c] sm:$0xff]
        %v1141 = vld [vmem:[%s190 + $0x74] sm:$0xf]
        %v1142 = vld [vmem:[%s190 + $0x7c] sm:$0xff]
        %v1143 = vld [vmem:[%s190 + $0x84] sm:$0xff]
        %v1144 = vld [vmem:[%s190 + $0x8c] sm:$0xf]
        %v1145 = vld [vmem:[%s190 + $0x94] sm:$0xff]
        %v1146 = vld [vmem:[%s190 + $0x9c] sm:$0xff]
        %v1147 = vld [vmem:[%s190 + $0xa4] sm:$0xf]
        %v1148 = vld [vmem:[%s190 + $0xac] sm:$0xff]
        %v1149 = vld [vmem:[%s190 + $0xb4] sm:$0xff]
        %v1150 = vld [vmem:[%s190 + $0xbc] sm:$0xf]
        %1151 = vset.pattern.permute.xlu0 2
        %1152 = vperm.xlu0 %1151, %v1116
        %v1153 = vpop.permute.xlu0 %1152
        %v1179 = vunpack.c.l.b16 %v1127
        %v1180 = vunpack.c.h.b16 %v1127
        %v1181 = vunpack.c.h.b16 %v1128
        %v1182 = vunpack.c.l.b16 %v1129
        %v1183 = vunpack.c.l.b16 %v1130
        %v1184 = vunpack.c.h.b16 %v1130
        %v1185 = vunpack.c.h.b16 %v1131
        %v1186 = vunpack.c.l.b16 %v1132
        %v1187 = vunpack.c.l.b16 %v1133
        %v1188 = vunpack.c.h.b16 %v1133
        %v1189 = vunpack.c.h.b16 %v1134
        %v1190 = vunpack.c.l.b16 %v1135
        %v1191 = vunpack.c.l.b16 %v1136
        %v1192 = vunpack.c.h.b16 %v1136
        %v1193 = vunpack.c.h.b16 %v1137
        %v1194 = vunpack.c.l.b16 %v1138
        %v1195 = vunpack.c.l.b16 %v1139
        %v1196 = vunpack.c.h.b16 %v1139
        %v1197 = vunpack.c.h.b16 %v1140
        %v1198 = vunpack.c.l.b16 %v1141
        %v1199 = vunpack.c.l.b16 %v1142
        %v1200 = vunpack.c.h.b16 %v1142
        %v1201 = vunpack.c.h.b16 %v1143
        %v1202 = vunpack.c.l.b16 %v1144
        %v1203 = vunpack.c.l.b16 %v1145
        %v1204 = vunpack.c.h.b16 %v1145
        %v1205 = vunpack.c.h.b16 %v1146
        %v1206 = vunpack.c.l.b16 %v1147
        %v1207 = vunpack.c.l.b16 %v1148
        %v1208 = vunpack.c.h.b16 %v1148
        %v1209 = vunpack.c.h.b16 %v1149
        %v1210 = vunpack.c.l.b16 %v1150
        %v1211 = vpack.c.b16 %v1183, %v1179
        %v1212 = vpack.c.b16 %v1184, %v1180
        %v1213 = vpack.c.b16 %v1185, %v1181
        %v1214 = vpack.c.b16 %v1186, %v1182
        %v1215 = vpack.c.b16 %v1191, %v1187
        %v1216 = vpack.c.b16 %v1192, %v1188
        %v1217 = vpack.c.b16 %v1193, %v1189
        %v1218 = vpack.c.b16 %v1194, %v1190
        %v1219 = vpack.c.b16 %v1199, %v1195
        %v1220 = vpack.c.b16 %v1200, %v1196
        %v1221 = vpack.c.b16 %v1201, %v1197
        %v1222 = vpack.c.b16 %v1202, %v1198
        %v1223 = vpack.c.b16 %v1207, %v1203
        %v1224 = vpack.c.b16 %v1208, %v1204
        %v1225 = vpack.c.b16 %v1209, %v1205
        %v1226 = vpack.c.b16 %v1210, %v1206
        %v1244 = vsel %vm460, %v1126, 0
        %1246 = vmatpush.bf16.msra.mxu0 0
        %1247 = vmatpush.bf16.msra.mxu0 0
        %1248 = vmatpush.bf16.msra.mxu0 0
        %1249 = vmatpush.bf16.msra.mxu0 0
        %1250 = vmatpush.bf16.msra.mxu0 %v1223
        %1251 = vmatpush.bf16.msra.mxu0 %v1219
        %1252 = vmatpush.bf16.msra.mxu0 %v1215
        %1253 = vmatpush.bf16.msra.mxu0 %v1211
        %1254 = vmatmul.bf16.gmra.mxu0 %v1244
        %v1255 = vpop.f32.mrf.mxu0
        %v1256 = vadd.f32 %v1153, %v1255
        %v1257 = vpop.f32.mrf.mxu0
        %1258 = vdwg.mxu0
        %1259 = vmatpush.bf16.msra.mxu0 0
        %1260 = vmatpush.bf16.msra.mxu0 0
        %1261 = vmatpush.bf16.msra.mxu0 0
        %1262 = vmatpush.bf16.msra.mxu0 0
        %1263 = vmatpush.bf16.msra.mxu0 %v1224
        %1264 = vmatpush.bf16.msra.mxu0 %v1220
        %1265 = vmatpush.bf16.msra.mxu0 %v1216
        %1266 = vmatpush.bf16.msra.mxu0 %v1212
        %1267 = vmatmul.bf16.gmra.mxu0 %v1244
        %v1268 = vpop.f32.mrf.mxu0
        %v1269 = vadd.f32 %v1153, %v1268
        %v1270 = vpop.f32.mrf.mxu0
        %1271 = vdwg.mxu0
        %1272 = vmatpush.bf16.msra.mxu0 0
        %1273 = vmatpush.bf16.msra.mxu0 0
        %1274 = vmatpush.bf16.msra.mxu0 0
        %1275 = vmatpush.bf16.msra.mxu0 0
        %1276 = vmatpush.bf16.msra.mxu0 %v1225
        %1277 = vmatpush.bf16.msra.mxu0 %v1221
        %1278 = vmatpush.bf16.msra.mxu0 %v1217
        %1279 = vmatpush.bf16.msra.mxu0 %v1213
        %1280 = vmatmul.bf16.gmra.mxu0 %v1244
        %v1281 = vpop.f32.mrf.mxu0
        %v1282 = vadd.f32 %v1153, %v1281
        %v1283 = vpop.f32.mrf.mxu0
        %1284 = vdwg.mxu0
        %1285 = vmatpush.bf16.msra.mxu0 0
        %1286 = vmatpush.bf16.msra.mxu0 0
        %1287 = vmatpush.bf16.msra.mxu0 0
        %1288 = vmatpush.bf16.msra.mxu0 0
        %1289 = vmatpush.bf16.msra.mxu0 %v1226
        %1290 = vmatpush.bf16.msra.mxu0 %v1222
        %1291 = vmatpush.bf16.msra.mxu0 %v1218
        %1292 = vmatpush.bf16.msra.mxu0 %v1214
        %1293 = vmatmul.bf16.gmra.mxu0 %v1244
        %v1294 = vpop.f32.mrf.mxu0
        %v1295 = vadd.f32 %v1153, %v1294
        %v1296 = vpop.f32.mrf.mxu0
        %1297 = vdwg.mxu0
        %v1298 = vmax.f32 %v1122, 0.0
        %v1299 = vmax.f32 %v1123, 0.0
        %v1300 = vadd.f32 %v1298, %v1256
        %v1301 = vadd.f32 %v1299, %v1269
        %v1302 = vmax.f32 %v1300, 0.0
        %v1303 = vmax.f32 %v1301, 0.0
        %v1304 = vpack.c.bf16 %v1303, %v1302
        %1305 = vst [vmem:[#allocation2 + $0x4] sm:$0xff] %v1304
        %v1306 = vmax.f32 %v1124, 0.0
        %v1307 = vmax.f32 %v1125, 0.0
        %v1308 = vadd.f32 %v1306, %v1282
        %v1309 = vadd.f32 %v1307, %v1295
        %v1310 = vmax.f32 %v1308, 0.0
        %v1311 = vmax.f32 %v1309, 0.0
        %v1312 = vpack.c.bf16 %v1311, %v1310
        %1313 = vst [vmem:[#allocation2 + $0x10] sm:$0xff] %v1312
        %v1314 = vld [vmem:[#allocation7 + $0x38] sm:$0xf]
        %v1315 = vld [vmem:[#allocation2] sm:$0xff]
        %v1316 = vld [vmem:[#allocation2 + $0x8] sm:$0xff]
        %v1317 = vld [vmem:[#allocation2 + $0x10] sm:$0xff]
        %v1318 = vld [vmem:[#allocation7 + $0x40] sm:$0xf]
        %v1322 = vunpack.c.l.b16 %v1315
        %v1323 = vunpack.c.h.b16 %v1315
        %v1324 = vunpack.c.l.b16 %v1316
        %v1325 = vunpack.c.h.b16 %v1316
        %v1326 = vunpack.c.l.b16 %v1317
        %v1327 = vunpack.c.h.b16 %v1317
        %v1328 = vpack.c.b16 %v1322, %v1322
        %v1329 = vpack.c.b16 %v1323, %v1323
        %v1330 = vpack.c.b16 %v1324, %v1324
        %v1331 = vpack.c.b16 %v1325, %v1325
        %v1332 = vpack.c.b16 %v1326, %v1326
        %v1333 = vpack.c.b16 %v1327, %v1327
        %1334 = vrot.lane.b32.xlu0 %v1328, 2
        %v1335 = vpop.permute.xlu0 %1334
        %1336 = vrot.lane.b32.xlu0 %v1329, 2
        %v1337 = vpop.permute.xlu0 %1336
        %1338 = vrot.lane.b32.xlu0 %v1330, 2
        %v1339 = vpop.permute.xlu0 %1338
        %1340 = vrot.lane.b32.xlu0 %v1331, 2
        %v1341 = vpop.permute.xlu0 %1340
        %1342 = vrot.lane.b32.xlu0 %v1332, 2
        %v1343 = vpop.permute.xlu0 %1342
        %1344 = vrot.lane.b32.xlu0 %v1333, 2
        %v1345 = vpop.permute.xlu0 %1344
        %v1346 = vsel %vm564, %v1335, %v1337
        %v1347 = vsel %vm564, %v1337, %v1339
        %v1348 = vsel %vm564, %v1341, %v1343
        %v1349 = vsel %vm564, %v1343, %v1345
        %v1351 = vsel %vm878, %v1318, 0
        %v1354 = vsel %vm882, %v1346, 0
        %v1357 = vsel %vm882, %v1347, 0
        %v1360 = vsel %vm882, %v1348, 0
        %v1363 = vsel %vm882, %v1349, 0
        %1365 = vmatpush.bf16.msra.mxu0 0
        %1366 = vmatpush.bf16.msra.mxu0 0
        %1367 = vmatpush.bf16.msra.mxu0 0
        %1368 = vmatpush.bf16.msra.mxu0 0
        %1369 = vmatpush.bf16.msra.mxu0 0
        %1370 = vmatpush.bf16.msra.mxu0 0
        %1371 = vmatpush.bf16.msra.mxu0 0
        %1372 = vmatpush.bf16.msra.mxu0 %v1354
        %1373 = vmatmul.bf16.gmra.mxu0 %v1351
        %v1374 = vpop.f32.mrf.mxu0
        %v1375 = vadd.f32 0.0, %v1374
        %v1376 = vpop.f32.mrf.mxu0
        %1377 = vdwg.mxu0
        %1378 = vmatpush.bf16.msra.mxu0 0
        %1379 = vmatpush.bf16.msra.mxu0 0
        %1380 = vmatpush.bf16.msra.mxu0 0
        %1381 = vmatpush.bf16.msra.mxu0 0
        %1382 = vmatpush.bf16.msra.mxu0 0
        %1383 = vmatpush.bf16.msra.mxu0 0
        %1384 = vmatpush.bf16.msra.mxu0 0
        %1385 = vmatpush.bf16.msra.mxu0 %v1357
        %1386 = vmatmul.bf16.gmra.mxu0 %v1351
        %v1387 = vpop.f32.mrf.mxu0
        %v1388 = vadd.f32 0.0, %v1387
        %v1389 = vpop.f32.mrf.mxu0
        %1390 = vdwg.mxu0
        %1391 = vmatpush.bf16.msra.mxu0 0
        %1392 = vmatpush.bf16.msra.mxu0 0
        %1393 = vmatpush.bf16.msra.mxu0 0
        %1394 = vmatpush.bf16.msra.mxu0 0
        %1395 = vmatpush.bf16.msra.mxu0 0
        %1396 = vmatpush.bf16.msra.mxu0 0
        %1397 = vmatpush.bf16.msra.mxu0 0
        %1398 = vmatpush.bf16.msra.mxu0 %v1360
        %1399 = vmatmul.bf16.gmra.mxu0 %v1351
        %v1400 = vpop.f32.mrf.mxu0
        %v1401 = vadd.f32 0.0, %v1400
        %v1402 = vpop.f32.mrf.mxu0
        %1403 = vdwg.mxu0
        %1404 = vmatpush.bf16.msra.mxu0 0
        %1405 = vmatpush.bf16.msra.mxu0 0
        %1406 = vmatpush.bf16.msra.mxu0 0
        %1407 = vmatpush.bf16.msra.mxu0 0
        %1408 = vmatpush.bf16.msra.mxu0 0
        %1409 = vmatpush.bf16.msra.mxu0 0
        %1410 = vmatpush.bf16.msra.mxu0 0
        %1411 = vmatpush.bf16.msra.mxu0 %v1363
        %1412 = vmatmul.bf16.gmra.mxu0 %v1351
        %v1413 = vpop.f32.mrf.mxu0
        %v1414 = vadd.f32 0.0, %v1413
        %v1415 = vpop.f32.mrf.mxu0
        %1416 = vdwg.mxu0
        %1417 = vrot.lane.b32.xlu0 %v1328, 4
        %v1418 = vpop.permute.xlu0 %1417
        %1419 = vrot.lane.b32.xlu0 %v1329, 4
        %v1420 = vpop.permute.xlu0 %1419
        %1421 = vrot.lane.b32.xlu0 %v1330, 4
        %v1422 = vpop.permute.xlu0 %1421
        %1423 = vrot.lane.b32.xlu0 %v1331, 4
        %v1424 = vpop.permute.xlu0 %1423
        %1425 = vrot.lane.b32.xlu0 %v1332, 4
        %v1426 = vpop.permute.xlu0 %1425
        %1427 = vrot.lane.b32.xlu0 %v1333, 4
        %v1428 = vpop.permute.xlu0 %1427
        %vm1429 = vcmask 31744
        %v1430 = vsel %vm1429, %v1418, %v1420
        %v1431 = vsel %vm1429, %v1420, %v1422
        %v1432 = vsel %vm1429, %v1424, %v1426
        %v1433 = vsel %vm1429, %v1426, %v1428
        %v1435 = vsel %vm878, %v1314, 0
        %v1438 = vsel %vm882, %v1430, 0
        %v1441 = vsel %vm882, %v1431, 0
        %v1444 = vsel %vm882, %v1432, 0
        %v1447 = vsel %vm882, %v1433, 0
        %1449 = vmatpush.bf16.msra.mxu0 0
        %1450 = vmatpush.bf16.msra.mxu0 0
        %1451 = vmatpush.bf16.msra.mxu0 0
        %1452 = vmatpush.bf16.msra.mxu0 0
        %1453 = vmatpush.bf16.msra.mxu0 0
        %1454 = vmatpush.bf16.msra.mxu0 0
        %1455 = vmatpush.bf16.msra.mxu0 0
        %1456 = vmatpush.bf16.msra.mxu0 %v1438
        %1457 = vmatmul.bf16.gmra.mxu0 %v1435
        %v1458 = vpop.f32.mrf.mxu0
        %v1459 = vadd.f32 %v1375, %v1458
        %v1460 = vpop.f32.mrf.mxu0
        %1461 = vdwg.mxu0
        %1462 = vmatpush.bf16.msra.mxu0 0
        %1463 = vmatpush.bf16.msra.mxu0 0
        %1464 = vmatpush.bf16.msra.mxu0 0
        %1465 = vmatpush.bf16.msra.mxu0 0
        %1466 = vmatpush.bf16.msra.mxu0 0
        %1467 = vmatpush.bf16.msra.mxu0 0
        %1468 = vmatpush.bf16.msra.mxu0 0
        %1469 = vmatpush.bf16.msra.mxu0 %v1441
        %1470 = vmatmul.bf16.gmra.mxu0 %v1435
        %v1471 = vpop.f32.mrf.mxu0
        %v1472 = vadd.f32 %v1388, %v1471
        %v1473 = vpop.f32.mrf.mxu0
        %1474 = vdwg.mxu0
        %1475 = vmatpush.bf16.msra.mxu0 0
        %1476 = vmatpush.bf16.msra.mxu0 0
        %1477 = vmatpush.bf16.msra.mxu0 0
        %1478 = vmatpush.bf16.msra.mxu0 0
        %1479 = vmatpush.bf16.msra.mxu0 0
        %1480 = vmatpush.bf16.msra.mxu0 0
        %1481 = vmatpush.bf16.msra.mxu0 0
        %1482 = vmatpush.bf16.msra.mxu0 %v1444
        %1483 = vmatmul.bf16.gmra.mxu0 %v1435
        %v1484 = vpop.f32.mrf.mxu0
        %v1485 = vadd.f32 %v1401, %v1484
        %v1486 = vpop.f32.mrf.mxu0
        %1487 = vdwg.mxu0
        %1488 = vmatpush.bf16.msra.mxu0 0
        %1489 = vmatpush.bf16.msra.mxu0 0
        %1490 = vmatpush.bf16.msra.mxu0 0
        %1491 = vmatpush.bf16.msra.mxu0 0
        %1492 = vmatpush.bf16.msra.mxu0 0
        %1493 = vmatpush.bf16.msra.mxu0 0
        %1494 = vmatpush.bf16.msra.mxu0 0
        %1495 = vmatpush.bf16.msra.mxu0 %v1447
        %1496 = vmatmul.bf16.gmra.mxu0 %v1435
        %v1497 = vpop.f32.mrf.mxu0
        %v1498 = vadd.f32 %v1414, %v1497
        %v1499 = vpop.f32.mrf.mxu0
        %1500 = vdwg.mxu0
        %v1501 = vld [vmem:[#allocation7 + $0x48] sm:$0xf]
        %v1502 = vld [vmem:[#allocation2 + $0x4] sm:$0xff]
        %v1503 = vld [vmem:[#allocation2 + $0xc] sm:$0xff]
        %v1504 = vld [vmem:[#allocation2 + $0x14] sm:$0xf]
        %v1508 = vunpack.c.l.b16 %v1502
        %v1509 = vunpack.c.h.b16 %v1502
        %v1510 = vunpack.c.h.b16 %v1503
        %v1511 = vunpack.c.l.b16 %v1504
        %v1512 = vpack.c.b16 %v1508, %v1508
        %v1513 = vpack.c.b16 %v1509, %v1509
        %v1514 = vpack.c.b16 %v1510, %v1510
        %v1515 = vpack.c.b16 %v1511, %v1511
        %v1517 = vsel %vm878, %v1501, 0
        %v1520 = vsel %vm882, %v1512, 0
        %v1523 = vsel %vm882, %v1513, 0
        %v1526 = vsel %vm882, %v1514, 0
        %v1529 = vsel %vm882, %v1515, 0
        %1531 = vmatpush.bf16.msra.mxu0 0
        %1532 = vmatpush.bf16.msra.mxu0 0
        %1533 = vmatpush.bf16.msra.mxu0 0
        %1534 = vmatpush.bf16.msra.mxu0 0
        %1535 = vmatpush.bf16.msra.mxu0 0
        %1536 = vmatpush.bf16.msra.mxu0 0
        %1537 = vmatpush.bf16.msra.mxu0 0
        %1538 = vmatpush.bf16.msra.mxu0 %v1520
        %1539 = vmatmul.bf16.gmra.mxu0 %v1517
        %v1540 = vpop.f32.mrf.mxu0
        %v1541 = vadd.f32 0.0, %v1540
        %v1542 = vpop.f32.mrf.mxu0
        %1543 = vdwg.mxu0
        %1544 = vmatpush.bf16.msra.mxu0 0
        %1545 = vmatpush.bf16.msra.mxu0 0
        %1546 = vmatpush.bf16.msra.mxu0 0
        %1547 = vmatpush.bf16.msra.mxu0 0
        %1548 = vmatpush.bf16.msra.mxu0 0
        %1549 = vmatpush.bf16.msra.mxu0 0
        %1550 = vmatpush.bf16.msra.mxu0 0
        %1551 = vmatpush.bf16.msra.mxu0 %v1523
        %1552 = vmatmul.bf16.gmra.mxu0 %v1517
        %v1553 = vpop.f32.mrf.mxu0
        %v1554 = vadd.f32 0.0, %v1553
        %v1555 = vpop.f32.mrf.mxu0
        %1556 = vdwg.mxu0
        %1557 = vmatpush.bf16.msra.mxu0 0
        %1558 = vmatpush.bf16.msra.mxu0 0
        %1559 = vmatpush.bf16.msra.mxu0 0
        %1560 = vmatpush.bf16.msra.mxu0 0
        %1561 = vmatpush.bf16.msra.mxu0 0
        %1562 = vmatpush.bf16.msra.mxu0 0
        %1563 = vmatpush.bf16.msra.mxu0 0
        %1564 = vmatpush.bf16.msra.mxu0 %v1526
        %1565 = vmatmul.bf16.gmra.mxu0 %v1517
        %v1566 = vpop.f32.mrf.mxu0
        %v1567 = vadd.f32 0.0, %v1566
        %v1568 = vpop.f32.mrf.mxu0
        %1569 = vdwg.mxu0
        %1570 = vmatpush.bf16.msra.mxu0 0
        %1571 = vmatpush.bf16.msra.mxu0 0
        %1572 = vmatpush.bf16.msra.mxu0 0
        %1573 = vmatpush.bf16.msra.mxu0 0
        %1574 = vmatpush.bf16.msra.mxu0 0
        %1575 = vmatpush.bf16.msra.mxu0 0
        %1576 = vmatpush.bf16.msra.mxu0 0
        %1577 = vmatpush.bf16.msra.mxu0 %v1529
        %1578 = vmatmul.bf16.gmra.mxu0 %v1517
        %v1579 = vpop.f32.mrf.mxu0
        %v1580 = vadd.f32 0.0, %v1579
        %v1581 = vpop.f32.mrf.mxu0
        %1582 = vdwg.mxu0
        %v1583 = vadd.f32 %v1459, %v1541
        %v1584 = vadd.f32 %v1472, %v1554
        %v1585 = vadd.f32 %v1485, %v1567
        %v1586 = vadd.f32 %v1498, %v1580
        %v1587 = vld [vmem:[#allocation9] sm:$0xff]
        %1589 = vset.pattern.permute.xlu0 3
        %1590 = vperm.xlu0 %1589, %v1587
        %v1591 = vpop.permute.xlu0 %1590
        %v1593 = vadd.f32 %v1583, %v1591
        %v1594 = vadd.f32 %v1584, %v1591
        %v1595 = vadd.f32 %v1585, %v1591
        %v1596 = vadd.f32 %v1586, %v1591
        %v1597 = vmax.f32 %v1593, 0.0
        %v1598 = vmax.f32 %v1594, 0.0
        %v1599 = vpack.c.bf16 %v1598, %v1597
        %1600 = vst [vmem:[#allocation3 + $0x4] sm:$0xff] %v1599
        %v1601 = vmax.f32 %v1595, 0.0
        %v1602 = vmax.f32 %v1596, 0.0
        %v1603 = vpack.c.bf16 %v1602, %v1601
        %1604 = vst [vmem:[#allocation3 + $0x10] sm:$0xff] %v1603
        %v1605 = vld [vmem:[#allocation7 + $0x50] sm:$0xf]
        %v1606 = vld [vmem:[#allocation3] sm:$0xff]
        %v1607 = vld [vmem:[#allocation3 + $0x8] sm:$0xff]
        %v1608 = vld [vmem:[#allocation3 + $0x10] sm:$0xff]
        %v1609 = vld [vmem:[#allocation7 + $0x58] sm:$0xf]
        %v1613 = vunpack.c.l.b16 %v1606
        %v1614 = vunpack.c.h.b16 %v1606
        %v1615 = vunpack.c.l.b16 %v1607
        %v1616 = vunpack.c.h.b16 %v1607
        %v1617 = vunpack.c.l.b16 %v1608
        %v1618 = vunpack.c.h.b16 %v1608
        %v1619 = vpack.c.b16 %v1613, %v1613
        %v1620 = vpack.c.b16 %v1614, %v1614
        %v1621 = vpack.c.b16 %v1615, %v1615
        %v1622 = vpack.c.b16 %v1616, %v1616
        %v1623 = vpack.c.b16 %v1617, %v1617
        %v1624 = vpack.c.b16 %v1618, %v1618
        %1625 = vrot.lane.b32.xlu0 %v1619, 2
        %v1626 = vpop.permute.xlu0 %1625
        %1627 = vrot.lane.b32.xlu0 %v1620, 2
        %v1628 = vpop.permute.xlu0 %1627
        %1629 = vrot.lane.b32.xlu0 %v1621, 2
        %v1630 = vpop.permute.xlu0 %1629
        %1631 = vrot.lane.b32.xlu0 %v1622, 2
        %v1632 = vpop.permute.xlu0 %1631
        %1633 = vrot.lane.b32.xlu0 %v1623, 2
        %v1634 = vpop.permute.xlu0 %1633
        %1635 = vrot.lane.b32.xlu0 %v1624, 2
        %v1636 = vpop.permute.xlu0 %1635
        %v1637 = vsel %vm564, %v1626, %v1628
        %v1638 = vsel %vm564, %v1628, %v1630
        %v1639 = vsel %vm564, %v1632, %v1634
        %v1640 = vsel %vm564, %v1634, %v1636
        %v1642 = vsel %vm878, %v1609, 0
        %v1645 = vsel %vm882, %v1637, 0
        %v1648 = vsel %vm882, %v1638, 0
        %v1651 = vsel %vm882, %v1639, 0
        %v1654 = vsel %vm882, %v1640, 0
        %1656 = vmatpush.bf16.msra.mxu0 0
        %1657 = vmatpush.bf16.msra.mxu0 0
        %1658 = vmatpush.bf16.msra.mxu0 0
        %1659 = vmatpush.bf16.msra.mxu0 0
        %1660 = vmatpush.bf16.msra.mxu0 0
        %1661 = vmatpush.bf16.msra.mxu0 0
        %1662 = vmatpush.bf16.msra.mxu0 0
        %1663 = vmatpush.bf16.msra.mxu0 %v1645
        %1664 = vmatmul.bf16.gmra.mxu0 %v1642
        %v1665 = vpop.f32.mrf.mxu0
        %v1666 = vadd.f32 0.0, %v1665
        %v1667 = vpop.f32.mrf.mxu0
        %1668 = vdwg.mxu0
        %1669 = vmatpush.bf16.msra.mxu0 0
        %1670 = vmatpush.bf16.msra.mxu0 0
        %1671 = vmatpush.bf16.msra.mxu0 0
        %1672 = vmatpush.bf16.msra.mxu0 0
        %1673 = vmatpush.bf16.msra.mxu0 0
        %1674 = vmatpush.bf16.msra.mxu0 0
        %1675 = vmatpush.bf16.msra.mxu0 0
        %1676 = vmatpush.bf16.msra.mxu0 %v1648
        %1677 = vmatmul.bf16.gmra.mxu0 %v1642
        %v1678 = vpop.f32.mrf.mxu0
        %v1679 = vadd.f32 0.0, %v1678
        %v1680 = vpop.f32.mrf.mxu0
        %1681 = vdwg.mxu0
        %1682 = vmatpush.bf16.msra.mxu0 0
        %1683 = vmatpush.bf16.msra.mxu0 0
        %1684 = vmatpush.bf16.msra.mxu0 0
        %1685 = vmatpush.bf16.msra.mxu0 0
        %1686 = vmatpush.bf16.msra.mxu0 0
        %1687 = vmatpush.bf16.msra.mxu0 0
        %1688 = vmatpush.bf16.msra.mxu0 0
        %1689 = vmatpush.bf16.msra.mxu0 %v1651
        %1690 = vmatmul.bf16.gmra.mxu0 %v1642
        %v1691 = vpop.f32.mrf.mxu0
        %v1692 = vadd.f32 0.0, %v1691
        %v1693 = vpop.f32.mrf.mxu0
        %1694 = vdwg.mxu0
        %1695 = vmatpush.bf16.msra.mxu0 0
        %1696 = vmatpush.bf16.msra.mxu0 0
        %1697 = vmatpush.bf16.msra.mxu0 0
        %1698 = vmatpush.bf16.msra.mxu0 0
        %1699 = vmatpush.bf16.msra.mxu0 0
        %1700 = vmatpush.bf16.msra.mxu0 0
        %1701 = vmatpush.bf16.msra.mxu0 0
        %1702 = vmatpush.bf16.msra.mxu0 %v1654
        %1703 = vmatmul.bf16.gmra.mxu0 %v1642
        %v1704 = vpop.f32.mrf.mxu0
        %v1705 = vadd.f32 0.0, %v1704
        %v1706 = vpop.f32.mrf.mxu0
        %1707 = vdwg.mxu0
        %1708 = vrot.lane.b32.xlu0 %v1619, 4
        %v1709 = vpop.permute.xlu0 %1708
        %1710 = vrot.lane.b32.xlu0 %v1620, 4
        %v1711 = vpop.permute.xlu0 %1710
        %1712 = vrot.lane.b32.xlu0 %v1621, 4
        %v1713 = vpop.permute.xlu0 %1712
        %1714 = vrot.lane.b32.xlu0 %v1622, 4
        %v1715 = vpop.permute.xlu0 %1714
        %1716 = vrot.lane.b32.xlu0 %v1623, 4
        %v1717 = vpop.permute.xlu0 %1716
        %1718 = vrot.lane.b32.xlu0 %v1624, 4
        %v1719 = vpop.permute.xlu0 %1718
        %v1720 = vsel %vm1429, %v1709, %v1711
        %v1721 = vsel %vm1429, %v1711, %v1713
        %v1722 = vsel %vm1429, %v1715, %v1717
        %v1723 = vsel %vm1429, %v1717, %v1719
        %v1725 = vsel %vm878, %v1605, 0
        %v1728 = vsel %vm882, %v1720, 0
        %v1731 = vsel %vm882, %v1721, 0
        %v1734 = vsel %vm882, %v1722, 0
        %v1737 = vsel %vm882, %v1723, 0
        %1739 = vmatpush.bf16.msra.mxu0 0
        %1740 = vmatpush.bf16.msra.mxu0 0
        %1741 = vmatpush.bf16.msra.mxu0 0
        %1742 = vmatpush.bf16.msra.mxu0 0
        %1743 = vmatpush.bf16.msra.mxu0 0
        %1744 = vmatpush.bf16.msra.mxu0 0
        %1745 = vmatpush.bf16.msra.mxu0 0
        %1746 = vmatpush.bf16.msra.mxu0 %v1728
        %1747 = vmatmul.bf16.gmra.mxu0 %v1725
        %v1748 = vpop.f32.mrf.mxu0
        %v1749 = vadd.f32 %v1666, %v1748
        %v1750 = vpop.f32.mrf.mxu0
        %1751 = vdwg.mxu0
        %1752 = vmatpush.bf16.msra.mxu0 0
        %1753 = vmatpush.bf16.msra.mxu0 0
        %1754 = vmatpush.bf16.msra.mxu0 0
        %1755 = vmatpush.bf16.msra.mxu0 0
        %1756 = vmatpush.bf16.msra.mxu0 0
        %1757 = vmatpush.bf16.msra.mxu0 0
        %1758 = vmatpush.bf16.msra.mxu0 0
        %1759 = vmatpush.bf16.msra.mxu0 %v1731
        %1760 = vmatmul.bf16.gmra.mxu0 %v1725
        %v1761 = vpop.f32.mrf.mxu0
        %v1762 = vadd.f32 %v1679, %v1761
        %v1763 = vpop.f32.mrf.mxu0
        %1764 = vdwg.mxu0
        %1765 = vmatpush.bf16.msra.mxu0 0
        %1766 = vmatpush.bf16.msra.mxu0 0
        %1767 = vmatpush.bf16.msra.mxu0 0
        %1768 = vmatpush.bf16.msra.mxu0 0
        %1769 = vmatpush.bf16.msra.mxu0 0
        %1770 = vmatpush.bf16.msra.mxu0 0
        %1771 = vmatpush.bf16.msra.mxu0 0
        %1772 = vmatpush.bf16.msra.mxu0 %v1734
        %1773 = vmatmul.bf16.gmra.mxu0 %v1725
        %v1774 = vpop.f32.mrf.mxu0
        %v1775 = vadd.f32 %v1692, %v1774
        %v1776 = vpop.f32.mrf.mxu0
        %1777 = vdwg.mxu0
        %1778 = vmatpush.bf16.msra.mxu0 0
        %1779 = vmatpush.bf16.msra.mxu0 0
        %1780 = vmatpush.bf16.msra.mxu0 0
        %1781 = vmatpush.bf16.msra.mxu0 0
        %1782 = vmatpush.bf16.msra.mxu0 0
        %1783 = vmatpush.bf16.msra.mxu0 0
        %1784 = vmatpush.bf16.msra.mxu0 0
        %1785 = vmatpush.bf16.msra.mxu0 %v1737
        %1786 = vmatmul.bf16.gmra.mxu0 %v1725
        %v1787 = vpop.f32.mrf.mxu0
        %v1788 = vadd.f32 %v1705, %v1787
        %v1789 = vpop.f32.mrf.mxu0
        %1790 = vdwg.mxu0
        %v1791 = vld [vmem:[#allocation7 + $0x60] sm:$0xf]
        %v1792 = vld [vmem:[#allocation3 + $0x4] sm:$0xff]
        %v1793 = vld [vmem:[#allocation3 + $0xc] sm:$0xff]
        %v1794 = vld [vmem:[#allocation3 + $0x14] sm:$0xf]
        %v1798 = vunpack.c.l.b16 %v1792
        %v1799 = vunpack.c.h.b16 %v1792
        %v1800 = vunpack.c.h.b16 %v1793
        %v1801 = vunpack.c.l.b16 %v1794
        %v1802 = vpack.c.b16 %v1798, %v1798
        %v1803 = vpack.c.b16 %v1799, %v1799
        %v1804 = vpack.c.b16 %v1800, %v1800
        %v1805 = vpack.c.b16 %v1801, %v1801
        %v1807 = vsel %vm878, %v1791, 0
        %v1810 = vsel %vm882, %v1802, 0
        %v1813 = vsel %vm882, %v1803, 0
        %v1816 = vsel %vm882, %v1804, 0
        %v1819 = vsel %vm882, %v1805, 0
        %1821 = vmatpush.bf16.msra.mxu0 0
        %1822 = vmatpush.bf16.msra.mxu0 0
        %1823 = vmatpush.bf16.msra.mxu0 0
        %1824 = vmatpush.bf16.msra.mxu0 0
        %1825 = vmatpush.bf16.msra.mxu0 0
        %1826 = vmatpush.bf16.msra.mxu0 0
        %1827 = vmatpush.bf16.msra.mxu0 0
        %1828 = vmatpush.bf16.msra.mxu0 %v1810
        %1829 = vmatmul.bf16.gmra.mxu0 %v1807
        %v1830 = vpop.f32.mrf.mxu0
        %v1831 = vadd.f32 0.0, %v1830
        %v1832 = vpop.f32.mrf.mxu0
        %1833 = vdwg.mxu0
        %1834 = vmatpush.bf16.msra.mxu0 0
        %1835 = vmatpush.bf16.msra.mxu0 0
        %1836 = vmatpush.bf16.msra.mxu0 0
        %1837 = vmatpush.bf16.msra.mxu0 0
        %1838 = vmatpush.bf16.msra.mxu0 0
        %1839 = vmatpush.bf16.msra.mxu0 0
        %1840 = vmatpush.bf16.msra.mxu0 0
        %1841 = vmatpush.bf16.msra.mxu0 %v1813
        %1842 = vmatmul.bf16.gmra.mxu0 %v1807
        %v1843 = vpop.f32.mrf.mxu0
        %v1844 = vadd.f32 0.0, %v1843
        %v1845 = vpop.f32.mrf.mxu0
        %1846 = vdwg.mxu0
        %1847 = vmatpush.bf16.msra.mxu0 0
        %1848 = vmatpush.bf16.msra.mxu0 0
        %1849 = vmatpush.bf16.msra.mxu0 0
        %1850 = vmatpush.bf16.msra.mxu0 0
        %1851 = vmatpush.bf16.msra.mxu0 0
        %1852 = vmatpush.bf16.msra.mxu0 0
        %1853 = vmatpush.bf16.msra.mxu0 0
        %1854 = vmatpush.bf16.msra.mxu0 %v1816
        %1855 = vmatmul.bf16.gmra.mxu0 %v1807
        %v1856 = vpop.f32.mrf.mxu0
        %v1857 = vadd.f32 0.0, %v1856
        %v1858 = vpop.f32.mrf.mxu0
        %1859 = vdwg.mxu0
        %1860 = vmatpush.bf16.msra.mxu0 0
        %1861 = vmatpush.bf16.msra.mxu0 0
        %1862 = vmatpush.bf16.msra.mxu0 0
        %1863 = vmatpush.bf16.msra.mxu0 0
        %1864 = vmatpush.bf16.msra.mxu0 0
        %1865 = vmatpush.bf16.msra.mxu0 0
        %1866 = vmatpush.bf16.msra.mxu0 0
        %1867 = vmatpush.bf16.msra.mxu0 %v1819
        %1868 = vmatmul.bf16.gmra.mxu0 %v1807
        %v1869 = vpop.f32.mrf.mxu0
        %v1870 = vadd.f32 0.0, %v1869
        %v1871 = vpop.f32.mrf.mxu0
        %1872 = vdwg.mxu0
        %v1873 = vadd.f32 %v1749, %v1831
        %v1874 = vadd.f32 %v1762, %v1844
        %v1875 = vadd.f32 %v1775, %v1857
        %v1876 = vadd.f32 %v1788, %v1870
        %v1877 = vld [vmem:[#allocation9] sm:$0xff]
        %1879 = vset.pattern.permute.xlu0 4
        %1880 = vperm.xlu0 %1879, %v1877
        %v1881 = vpop.permute.xlu0 %1880
        %v1883 = vadd.f32 %v1873, %v1881
        %v1884 = vadd.f32 %v1874, %v1881
        %v1885 = vadd.f32 %v1875, %v1881
        %v1886 = vadd.f32 %v1876, %v1881
        %v1887 = vmax.f32 %v1883, 0.0
        %v1888 = vmax.f32 %v1884, 0.0
        %v1889 = vld [vmem:[#allocation2 + $0x4] sm:$0xff]
        %v1890 = vunpack.c.l.bf16 %v1889
        %v1891 = vunpack.c.h.bf16 %v1889
        %v1892 = vadd.f32 %v1887, %v1890
        %v1893 = vadd.f32 %v1888, %v1891
        %v1894 = vmax.f32 %v1892, 0.0
        %v1895 = vmax.f32 %v1893, 0.0
        %v1896 = vpack.c.bf16 %v1895, %v1894
        %1897 = vst [vmem:[#allocation2 + $0x4] sm:$0xff] %v1896
        %v1898 = vmax.f32 %v1885, 0.0
        %v1899 = vmax.f32 %v1886, 0.0
        %v1900 = vld [vmem:[#allocation2 + $0x10] sm:$0xff]
        %v1901 = vunpack.c.l.bf16 %v1900
        %v1902 = vunpack.c.h.bf16 %v1900
        %v1903 = vadd.f32 %v1898, %v1901
        %v1904 = vadd.f32 %v1899, %v1902
        %v1905 = vmax.f32 %v1903, 0.0
        %v1906 = vmax.f32 %v1904, 0.0
        %v1907 = vpack.c.bf16 %v1906, %v1905
        %1908 = vst [vmem:[#allocation2 + $0x10] sm:$0xff] %v1907
        %v1909 = vld [vmem:[#allocation9] sm:$0xff]
        %v1910 = vld [vmem:[#allocation9] sm:$0x1]
        %v1911 = vld [vmem:[#allocation2 + $0x8] sm:$0xf]
        %v1912 = vunpack.c.l.bf16 %v1911
        %1914 = vrot.lane.b32.xlu0 %v1912, 12
        %v1915 = vpop.permute.xlu0 %1914
        %v1917 = vmul.f32 %v1909, %v1915
        %vm1918 = vcmask 48168
        %v1919 = vsel %vm1918, %v1917, 0.0
        %v1920 = vrot.slane %v1919, 4
        %v1921 = vadd.f32 %v1919, %v1920
        %v1922 = vrot.slane %v1921, 2
        %v1923 = vadd.f32 %v1921, %v1922
        %v1924 = vrot.slane %v1923, 1
        %v1925 = vadd.f32 %v1923, %v1924
        %1927 = vrot.lane.b32.xlu0 %v1910, 127
        %v1928 = vpop.permute.xlu0 %1927
        %v1930 = vadd.f32 %v1925, %v1928
        %v1931 = vsub.f32 0.0, %v1930
        %v1932 = vmul.f32 %v1931, 1.442695
        %v1933 = vpow.pop %v1932
        %v1934 = vadd.f32 %v1933, 1.0
        %v1935 = vrcp.pop %v1934
        %v1936 = vmul.f32 %v1934, %v1935
        %v1937 = vsub.f32 1.0, %v1936
        %v1938 = vmul.f32 %v1935, %v1937
        %v1939 = vadd.f32 %v1935, %v1938
        %vm1940 = vweird.f32 %v1934
        %vm1941 = vweird.f32 %v1935
        %vm1942 = vmor %vm1940, %vm1941
        %v1943 = vsel %vm1942, %v1935, %v1939
        %v1944 = vand.u32 2147483647, %v1934
        %vm1945 = vcmp.eq.f32.partialorder %v1944, 8.507059e+37
        %v1946 = vand.u32 %v1934, 2147483648
        %v1947 = vor.u32 1.1754944e-38, %v1946
        %v1948 = vsel %vm1945, %v1947, %v1943
        %v1949 = vmul.f32 1.0, %v1948
        %v1950 = vld [vmem:[#allocation2 + $0x14] sm:$0xf]
        %v1951 = vunpack.c.l.bf16 %v1950
        %1953 = vrot.lane.b32.xlu0 %v1951, 12
        %v1954 = vpop.permute.xlu0 %1953
        %v1956 = vmul.f32 %v1909, %v1954
        %v1957 = vsel %vm1918, %v1956, 0.0
        %v1958 = vrot.slane %v1957, 4
        %v1959 = vadd.f32 %v1957, %v1958
        %v1960 = vrot.slane %v1959, 2
        %v1961 = vadd.f32 %v1959, %v1960
        %v1962 = vrot.slane %v1961, 1
        %v1963 = vadd.f32 %v1961, %v1962
        %v1964 = vadd.f32 %v1963, %v1928
        %v1965 = vsub.f32 0.0, %v1964
        %v1966 = vmul.f32 %v1965, 1.442695
        %v1967 = vpow.pop %v1966
        %v1968 = vadd.f32 %v1967, 1.0
        %v1969 = vrcp.pop %v1968
        %v1970 = vmul.f32 %v1968, %v1969
        %v1971 = vsub.f32 1.0, %v1970
        %v1972 = vmul.f32 %v1969, %v1971
        %v1973 = vadd.f32 %v1969, %v1972
        %vm1974 = vweird.f32 %v1968
        %vm1975 = vweird.f32 %v1969
        %vm1976 = vmor %vm1974, %vm1975
        %v1977 = vsel %vm1976, %v1969, %v1973
        %v1978 = vand.u32 2147483647, %v1968
        %vm1979 = vcmp.eq.f32.partialorder %v1978, 8.507059e+37
        %v1980 = vand.u32 %v1968, 2147483648
        %v1981 = vor.u32 1.1754944e-38, %v1980
        %v1982 = vsel %vm1979, %v1981, %v1977
        %v1983 = vmul.f32 1.0, %v1982
        %1985 = vrot.lane.b32.xlu0 %v1949, 123
        %v1986 = vpop.permute.xlu0 %1985
        %1989 = vrot.lane.b32.xlu0 %v1983, 124
        %v1990 = vpop.permute.xlu0 %1989
        %vm1992 = vcmask 7168
        %v1993 = vsel %vm1992, %v1986, %v1990
        %vm1994 = vcmask 8192
        %1995 = vst.msk [vmem:[%s223] sm:$0x1] %vm1994, %v1993
        %s1996 = sand.u32 %s97, 1
        %s1997 = scalar_lea.sflag [#allocation6], %s1996
        %s1998 = sand.u32 %s97, 1
        %s1999 = smul.addr %s1998, 8
        %s2000 = scalar_lea.vmem [#allocation10], %s1999
        // Predicated region
        $region45: #{tpu_custom_call.1} parent=31 // pred_check
          %p2001 = pneg %p107
        $region46: #{tpu_custom_call.1} parent=31 // pred_check_branch
          %2003 = sbr.rel (%p2001) target = $region48
        $region47: #{tpu_custom_call.1} parent=31 // pred_region
          %2005 = vsyncadd %s1997, 0
          %s2006 = smul.addr %s21, 8
          %s2007 = scalar_lea.hbm %s3, %s2006
          %s2009 = sshll.u32 %s2000, 4
          %s2010 = int_to_ptr.vmem [resolvable:$true] %s2009
          %s2011 = sshll.u32 %s2007, 4
          %s2012 = int_to_ptr.hbm [resolvable:$true] %s2011
          %2014 = dma.vmem_to_hbm [thread:$0]  %s2010, 128, %s2012, %s1997
        $region48: #{tpu_custom_call.1} parent=31 // pred_fallthru
          _
      $region32: #{tpu_custom_call.1} parent=5 // pred_fallthru
        _
      %p2015 = scmp.le.s32.totalorder 2, %s16
      // Predicated region
      $region49: #{tpu_custom_call.1} parent=5 // pred_check
        %p2016 = pneg %p2015
      $region50: #{tpu_custom_call.1} parent=5 // pred_check_branch
        %2018 = sbr.rel (%p2016) target = $region52
      $region51: #{tpu_custom_call.1} parent=5 // pred_region
        %s2019 = ssub.s32 %s16, 2
        // Predicated region
        $region53: #{tpu_custom_call.1} parent=51 // pred_check
          %p2020 = pneg %p113
        $region54: #{tpu_custom_call.1} parent=51 // pred_check_branch
          %2022 = sbr.rel (%p2020) target = $region56
        $region55: #{tpu_custom_call.1} parent=51 // pred_region
          %s2023 = sand.u32 %s98, 1
          %s2024 = scalar_lea.sflag [#allocation6], %s2023
          %s2025 = sand.u32 %s98, 1
          %s2026 = smul.addr %s2025, 8
          %s2027 = scalar_lea.vmem [#allocation10], %s2026
          %2029 = dma.done %s2024, 128
        $region56: #{tpu_custom_call.1} parent=51 // pred_fallthru
          _
      $region52: #{tpu_custom_call.1} parent=5 // pred_fallthru
        _
    $region6: #{tpu_custom_call.1} parent=1 // loop_footer
      %s20 = sadd.s32 1, %s16
    $region7: #{tpu_custom_call.1} parent=1 // loop_footer_branch
      %15 = sbr.rel target = $region3
    $region8: #{tpu_custom_call.1} parent=1 // loop_exit
      _
    %2030 = vsyncpa [#allocation5], 1
    %s2031 = scalar_lea.sflag [#allocation5], 1
    %2032 = vsyncpa %s2031, 1
    %2033 = vsyncpa [#allocation8], 1
    %2034 = vsyncpa [#allocation6], 1
    %s2035 = scalar_lea.sflag [#allocation6], 1
    %2036 = vsyncpa %s2035, 1

</llo_original>
